<compile_context>
chip_gen: v7x
topology: tpu7x:2x2x1
jax: 0.10.0
libtpu: 0.0.40
codegen_flags: <defaults>
</compile_context>

<pallas_src>
import numpy as np
import jax
import jax.numpy as jnp
from jax.experimental import pallas as pl
from jax.experimental.pallas import tpu as pltpu

# ---------------- hyperparameters (small, consistent with MoleculePerceiverModel) ----
BATCH = 2
NUM_NODES = 8
NUM_EDGES = 16

N_ATOM_FEATS = 3        # atom feature columns (encoder sums one embedding per column)
N_BOND_FEATS = 2
ATOM_VOCAB = 16
BOND_VOCAB = 8
ATOM_EMB = 16           # atom_emb_dim
BOND_EMB = 16           # bond_emb_dim
NODE_PRE_DIM = 8        # node_preprocess_dim

INPUT_DIM = 2 * (ATOM_EMB + NODE_PRE_DIM) + BOND_EMB   # 2*atom + 2*node_pre + bond = 64

NUM_LATENTS = 8         # p_num_latents
LATENT_DIM = 32         # p_latent_dim
CROSS_HEADS = 1         # p_cross_heads
CROSS_DIM_HEAD = 32     # p_cross_dim_head
LATENT_HEADS = 2        # p_latent_heads
LATENT_DIM_HEAD = 16    # p_latent_dim_head
FF_MULT = 4
FF_DIM = FF_MULT * LATENT_DIM
HC = CROSS_HEADS * CROSS_DIM_HEAD          # 32
HS = LATENT_HEADS * LATENT_DIM_HEAD        # 32
NUM_OUT = 2
N_LAT = BATCH * NUM_LATENTS                # 16  (batch folded into rows)
N_E = BATCH * NUM_EDGES                    # 32
# p_depth = 1, p_latent_trsnfmr_depth = 1 (single cross-attn block + single latent block)
# TODO(synk): the Perceiver / PaddedAtomEncoder internals are not given in the source;
# a standard lucidrains-style 1-block Perceiver with GELU FFN and OGB-style padded
# embedding-sum encoders (row 0 = padding = zero vector) is assumed.

SLAB_W = 128            # lane width of the packed weight slabs
NEG_INF = -1e30

# raw (unpacked) params used by the pure-JAX reference
PARAM_ORDER = [
    "latents",
    "ca_lnq_g", "ca_lnq_b", "ca_lnkv_g", "ca_lnkv_b", "ca_wq", "ca_wk", "ca_wv", "ca_wo",
    "cf_ln_g", "cf_ln_b", "cf_w1", "cf_b1", "cf_w2", "cf_b2",
    "sa_ln_g", "sa_ln_b", "sa_wq", "sa_wk", "sa_wv", "sa_wo",
    "sf_ln_g", "sf_ln_b", "sf_w1", "sf_b1", "sf_w2", "sf_b2",
    "hd_ln_g", "hd_ln_b", "hd_w1", "hd_b1", "hd_w2", "hd_b2",
]

# ---------------- weight-slab layouts (static; packing + in-kernel unpack) ----------
W_LAYOUT = [                      # bf16 matrix slab: (name, rows, cols), padded to 128 cols
    ("ca_wq",    LATENT_DIM,  HC),
    ("ca_wkv",   INPUT_DIM,   2 * HC),        # ca_wk | ca_wv fused on columns
    ("ca_wo",    HC,          LATENT_DIM),
    ("cf_w1",    LATENT_DIM,  FF_DIM),
    ("cf_w2",    FF_DIM,      LATENT_DIM),
    ("sa_wqkv",  LATENT_DIM,  3 * HS),        # sa_wq | sa_wk | sa_wv fused on columns
    ("sa_wo",    HS,          LATENT_DIM),
    ("sf_w1",    LATENT_DIM,  FF_DIM),
    ("sf_w2",    FF_DIM,      LATENT_DIM),
    ("hd_w1",    LATENT_DIM,  LATENT_DIM),
    ("hd_w2",    LATENT_DIM,  SLAB_W),        # (D, 2) zero-padded to 128 cols -> lane-dense output
]
W_OFFSETS = {}
_off = 0
for _n, _r, _c in W_LAYOUT:
    W_OFFSETS[_n] = (_off, _r, _c)
    _off += _r
W_ROWS = ((_off + 15) // 16) * 16             # bf16 sublane-tile friendly (= 576)

V_LAYOUT = [                      # f32 vector slab: (name, cols) — one padded row per vector
    ("ca_lnq_g", LATENT_DIM), ("ca_lnq_b", LATENT_DIM),
    ("ca_lnkv_g", INPUT_DIM), ("ca_lnkv_b", INPUT_DIM),
    ("cf_ln_g", LATENT_DIM), ("cf_ln_b", LATENT_DIM),
    ("cf_b1", FF_DIM), ("cf_b2", LATENT_DIM),
    ("sa_ln_g", LATENT_DIM), ("sa_ln_b", LATENT_DIM),
    ("sf_ln_g", LATENT_DIM), ("sf_ln_b", LATENT_DIM),
    ("sf_b1", FF_DIM), ("sf_b2", LATENT_DIM),
    ("hd_ln_g", LATENT_DIM), ("hd_ln_b", LATENT_DIM),
    ("hd_b1", LATENT_DIM), ("hd_b2", SLAB_W),  # (1,2) zero-padded to 128 cols
]
V_OFFSETS = {n: (i, c) for i, (n, c) in enumerate(V_LAYOUT)}
V_ROWS = ((len(V_LAYOUT) + 7) // 8) * 8       # 24

AUX_LAYOUT = [                    # f32 aux slab: replicated latents + static biases/pool
    ("latents_rep", N_LAT, LATENT_DIM),       # latents pre-replicated over batch
    ("self_bias",   N_LAT, N_LAT),            # block-diag additive bias (0 / -1e30)
    ("pool_mat",    BATCH, N_LAT),            # per-batch mean-pool matrix (1/NUM_LATENTS)
]
AUX_OFFSETS = {}
_aoff = 0
for _n, _r, _c in AUX_LAYOUT:
    AUX_OFFSETS[_n] = (_aoff, _r, _c)
    _aoff += _r
AUX_ROWS = ((_aoff + 7) // 8) * 8             # 40


# ---------------- shared small math (used by kernel AND reference) --------------------
def _layernorm(v, g, b, eps=1e-5):
    # single-pass LN: mean(x) and mean(x*x) are independent lane reductions
    mu = jnp.mean(v, axis=-1, keepdims=True)
    ms = jnp.mean(v * v, axis=-1, keepdims=True)
    var = ms - mu * mu
    return (v - mu) * jax.lax.rsqrt(var + eps) * g + b


def _gelu(v):  # tanh-approx GELU (lowers to the EUP)
    return 0.5 * v * (1.0 + jnp.tanh(0.7978845608028654 * (v + 0.044715 * v * v * v)))


def _dot(a, b):  # f32 activation x activation
    return jnp.dot(a, b, preferred_element_type=jnp.float32)


def _bf16_dot(a, w):  # bf16 MXU path, f32 accumulation (w may already be bf16)
    return jnp.dot(a.astype(jnp.bfloat16), w.astype(jnp.bfloat16),
                   preferred_element_type=jnp.float32)


# ---------------- Pallas kernel --------------------------------------------------------
def perceiver_transfer_kernel(x_ref, cb_ref, w_ref, v_ref, aux_ref, out_ref):
    def W(name):
        off, r, c = W_OFFSETS[name]
        return w_ref[off:off + r, 0:c]          # bf16

    def V(name):
        i, c = V_OFFSETS[name]
        return v_ref[i:i + 1, 0:c]              # (1, c) f32 — broadcasts over rows

    def A(name):
        off, r, c = AUX_OFFSETS[name]
        return aux_ref[off:off + r, 0:c]        # f32

    def mm(a, w_bf16):                          # f32 act -> bf16 operand, f32 accumulate
        return jnp.dot(a.astype(jnp.bfloat16), w_bf16,
                       preferred_element_type=jnp.float32)

    def softmax_bias(logits, bias):
        # additive bias: 0 for valid, -1e30 for invalid (exact division; no approx recip)
        # TODO(synk): an all-invalid row degrades to a uniform distribution, same as the
        # reference / previous revision; original PyTorch behavior for that case is unknown.
        logits = logits + bias
        mx = jnp.max(logits, axis=-1, keepdims=True)
        ex = jnp.exp(logits - mx)
        return ex / jnp.sum(ex, axis=-1, keepdims=True)

    x = x_ref[...]                              # (N_E, INPUT_DIM) f32 edge tokens
    cross_bias = cb_ref[...]                    # (N_LAT, N_E) f32 additive bias
    self_bias = A("self_bias")                  # (N_LAT, N_LAT)
    pool_mat = A("pool_mat")                    # (BATCH, N_LAT)
    lat = A("latents_rep")                      # (N_LAT, D) — replication baked in at pack time

    # ---- Perceiver cross-attention: latents attend to masked edge tokens (block-diag batch)
    lat_n = _layernorm(lat, V("ca_lnq_g"), V("ca_lnq_b"))
    x_n = _layernorm(x, V("ca_lnkv_g"), V("ca_lnkv_b"))
    q = mm(lat_n, W("ca_wq"))                                   # (N_LAT, HC)
    kv = mm(x_n, W("ca_wkv"))                                   # (N_E, 2*HC) fused K|V
    k, v = kv[:, :HC], kv[:, HC:2 * HC]
    logits = jax.lax.dot_general(q, k, (((1,), (1,)), ((), ())),
                                 preferred_element_type=jnp.float32) * (float(HC) ** -0.5)
    p = softmax_bias(logits, cross_bias)
    lat = lat + mm(_dot(p, v), W("ca_wo"))

    # ---- cross-attention feed-forward
    h = _layernorm(lat, V("cf_ln_g"), V("cf_ln_b"))
    lat = lat + mm(_gelu(mm(h, W("cf_w1")) + V("cf_b1")), W("cf_w2")) + V("cf_b2")

    # ---- latent transformer self-attention: heads unrolled as 2-D matmuls on lane slices
    ln = _layernorm(lat, V("sa_ln_g"), V("sa_ln_b"))
    qkv = mm(ln, W("sa_wqkv"))                                  # (N_LAT, 3*HS) fused Q|K|V
    dh = LATENT_DIM_HEAD
    scale = float(dh) ** -0.5
    heads = []
    for hh in range(LATENT_HEADS):
        qh = qkv[:, hh * dh:(hh + 1) * dh]
        kh = qkv[:, HS + hh * dh:HS + (hh + 1) * dh]
        vh = qkv[:, 2 * HS + hh * dh:2 * HS + (hh + 1) * dh]
        sl = jax.lax.dot_general(qh, kh, (((1,), (1,)), ((), ())),
                                 preferred_element_type=jnp.float32) * scale
        sp = softmax_bias(sl, self_bias)
        heads.append(_dot(sp, vh))                              # (N_LAT, dh)
    o = jnp.concatenate(heads, axis=-1)                         # (N_LAT, HS)
    lat = lat + mm(o, W("sa_wo"))

    # ---- latent feed-forward
    h = _layernorm(lat, V("sf_ln_g"), V("sf_ln_b"))
    lat = lat + mm(_gelu(mm(h, W("sf_w1")) + V("sf_b1")), W("sf_w2")) + V("sf_b2")

    # ---- per-batch mean pool over latents (precomputed pool matrix; tiny MXU matmul)
    pooled = _dot(pool_mat, lat)                                # (BATCH, D)

    # ---- transfer head: LayerNorm -> Linear -> ReLU -> Linear(2)  (lane-dense padded output)
    pn = _layernorm(pooled, V("hd_ln_g"), V("hd_ln_b"))
    h1 = jnp.maximum(mm(pn, W("hd_w1")) + V("hd_b1"), 0.0)
    out_ref[...] = mm(h1, W("hd_w2")) + V("hd_b2")              # (BATCH, 128); cols 0:2 = logits


def build_cross_bias(edge_mask):
    """Additive f32 bias (N_LAT, N_E): 0 where latent-row's batch matches the edge's batch
    AND the edge is valid; -1e30 otherwise.  Built in the wrapper (cheap XLA glue)."""
    bs, E = edge_mask.shape
    n_lat, n_e = bs * NUM_LATENTS, bs * E
    rb = np.arange(n_lat)[:, None] // NUM_LATENTS          # static block-diag part
    cb = np.arange(n_e)[None, :] // E
    block = jnp.asarray(rb == cb)
    valid = jnp.logical_and(block, edge_mask.reshape(1, n_e))
    return jnp.where(valid, 0.0, NEG_INF).astype(jnp.float32)


def perceiver_transfer_pallas(x, edge_mask, w_slab, v_slab, aux_slab):
    """x: (bs, E, INPUT_DIM) f32 edge tokens, edge_mask: (bs, E) bool. Returns (bs, 2) logits."""
    bs, E, din = x.shape
    x2 = x.reshape(bs * E, din).astype(jnp.float32)
    cross_bias = build_cross_bias(edge_mask)

    out = pl.pallas_call(
        perceiver_transfer_kernel,
        out_shape=jax.ShapeDtypeStruct((bs, SLAB_W), jnp.float32),
        grid=(1,),
        in_specs=[
            pl.BlockSpec((bs * E, din), lambda i: (0, 0)),       # all edge tokens, batch folded
            pl.BlockSpec(cross_bias.shape, lambda i: (0, 0)),    # cross-attn additive bias
            pl.BlockSpec(w_slab.shape, lambda i: (0, 0)),        # packed bf16 matrix slab
            pl.BlockSpec(v_slab.shape, lambda i: (0, 0)),        # packed f32 vector slab
            pl.BlockSpec(aux_slab.shape, lambda i: (0, 0)),      # latents / self-bias / pool
        ],
        out_specs=pl.BlockSpec((bs, SLAB_W), lambda i: (0, 0)),
        compiler_params=pltpu.CompilerParams(dimension_semantics=("arbitrary",)),
        cost_estimate=pl.CostEstimate(flops=2_000_000, transcendentals=4_000,
                                      bytes_accessed=220_000),
    )(x2, cross_bias, w_slab, v_slab, aux_slab)
    return out[:, :NUM_OUT]


# ---------------- weight packing --------------------------------------------------------
def pack_params(p):
    """Pack params into a bf16 matrix slab, an f32 vector slab and an f32 aux slab."""
    mats = {
        "ca_wq": p["ca_wq"],
        "ca_wkv": jnp.concatenate([p["ca_wk"], p["ca_wv"]], axis=1),
        "ca_wo": p["ca_wo"],
        "cf_w1": p["cf_w1"], "cf_w2": p["cf_w2"],
        "sa_wqkv": jnp.concatenate([p["sa_wq"], p["sa_wk"], p["sa_wv"]], axis=1),
        "sa_wo": p["sa_wo"],
        "sf_w1": p["sf_w1"], "sf_w2": p["sf_w2"],
        "hd_w1": p["hd_w1"],
        "hd_w2": jnp.pad(p["hd_w2"], ((0, 0), (0, SLAB_W - NUM_OUT))),
    }
    rows = []
    for name, r, c in W_LAYOUT:
        w = mats[name].astype(jnp.float32)
        assert w.shape == (r, c), (name, w.shape, (r, c))
        rows.append(jnp.pad(w, ((0, 0), (0, SLAB_W - c))))
    w_slab = jnp.concatenate(rows, axis=0)
    w_slab = jnp.pad(w_slab, ((0, W_ROWS - w_slab.shape[0]), (0, 0)))
    w_slab = w_slab.astype(jnp.bfloat16)                         # halves weight DMA / VMEM

    vpacked = dict(p)
    vpacked["hd_b2"] = jnp.pad(p["hd_b2"], ((0, 0), (0, SLAB_W - NUM_OUT)))
    vrows = []
    for name, c in V_LAYOUT:
        vrow = vpacked[name].astype(jnp.float32).reshape(1, -1)
        assert vrow.shape == (1, c), (name, vrow.shape, c)
        vrows.append(jnp.pad(vrow, ((0, 0), (0, SLAB_W - c))))
    v_slab = jnp.concatenate(vrows, axis=0)
    v_slab = jnp.pad(v_slab, ((0, V_ROWS - v_slab.shape[0]), (0, 0)))

    # aux slab: replicated latents (f32, keeps the residual stream full precision),
    # self-attn block-diag additive bias and per-batch mean-pool matrix (both static).
    lat_rep = jnp.tile(p["latents"].astype(jnp.float32), (BATCH, 1))          # (N_LAT, D)
    rb = np.arange(N_LAT)[:, None] // NUM_LATENTS
    cb = np.arange(N_LAT)[None, :] // NUM_LATENTS
    self_bias = jnp.asarray(np.where(rb == cb, 0.0, NEG_INF).astype(np.float32))
    pr = np.arange(BATCH)[:, None]
    pc = np.arange(N_LAT)[None, :] // NUM_LATENTS
    pool_mat = jnp.asarray(np.where(pr == pc, 1.0 / NUM_LATENTS, 0.0).astype(np.float32))
    aux_blocks = {"latents_rep": lat_rep, "self_bias": self_bias, "pool_mat": pool_mat}
    arows = []
    for name, r, c in AUX_LAYOUT:
        a = aux_blocks[name]
        assert a.shape == (r, c), (name, a.shape, (r, c))
        arows.append(jnp.pad(a, ((0, 0), (0, SLAB_W - c))))
    aux_slab = jnp.concatenate(arows, axis=0)
    aux_slab = jnp.pad(aux_slab, ((0, AUX_ROWS - aux_slab.shape[0]), (0, 0)))
    return w_slab, v_slab, aux_slab


# ---------------- JAX glue: encoders + edge-token construction ------------------------
def padded_embedding_sum(idx, tables):
    # idx: (bs, n, K) int32; tables: list of (V, emb).  Row 0 is the padding row (zeros).
    out = jnp.zeros(idx.shape[:2] + (tables[0].shape[1],), jnp.float32)
    for i, tbl in enumerate(tables):
        out = out + jnp.take(tbl, idx[:, :, i], axis=0)
    return out


def get_node_feature_pairs(edge_index, node_encodings):
    x1 = jnp.take_along_axis(node_encodings, edge_index[:, :, 0:1], axis=1)
    x2 = jnp.take_along_axis(node_encodings, edge_index[:, :, 1:2], axis=1)
    return x1, x2


def build_edge_tokens(node_features, node_preprocess_feat, edge_index, edge_features, params):
    node_enc = jnp.concatenate(
        [padded_embedding_sum(node_features, params["atom_tables"]), node_preprocess_feat],
        axis=2)
    x1, x2 = get_node_feature_pairs(edge_index, node_enc)
    x3 = padded_embedding_sum(edge_features, params["bond_tables"])
    return jnp.concatenate([x1, x2, x3], axis=2)        # (bs, E, INPUT_DIM)


# ---------------- deterministic parameter init ----------------------------------------
def init_params(key):
    ki = iter(jax.random.split(key, 64))

    def nrm(shape, scale=0.1):
        return (jax.random.normal(next(ki), shape) * scale).astype(jnp.float32)

    def ones(shape):
        return jnp.ones(shape, jnp.float32)

    def zeros(shape):
        return jnp.zeros(shape, jnp.float32)

    D, DIN, FF = LATENT_DIM, INPUT_DIM, FF_DIM

    p = {}
    p["atom_tables"] = [nrm((ATOM_VOCAB, ATOM_EMB)).at[0].set(0.0) for _ in range(N_ATOM_FEATS)]
    p["bond_tables"] = [nrm((BOND_VOCAB, BOND_EMB)).at[0].set(0.0) for _ in range(N_BOND_FEATS)]
    p["latents"] = nrm((NUM_LATENTS, D))
    p.update(
        ca_lnq_g=ones((1, D)), ca_lnq_b=zeros((1, D)),
        ca_lnkv_g=ones((1, DIN)), ca_lnkv_b=zeros((1, DIN)),
        ca_wq=nrm((D, HC)), ca_wk=nrm((DIN, HC)), ca_wv=nrm((DIN, HC)), ca_wo=nrm((HC, D)),
        cf_ln_g=ones((1, D)), cf_ln_b=zeros((1, D)),
        cf_w1=nrm((D, FF)), cf_b1=zeros((1, FF)), cf_w2=nrm((FF, D)), cf_b2=zeros((1, D)),
        sa_ln_g=ones((1, D)), sa_ln_b=zeros((1, D)),
        sa_wq=nrm((D, HS)), sa_wk=nrm((D, HS)), sa_wv=nrm((D, HS)), sa_wo=nrm((HS, D)),
        sf_ln_g=ones((1, D)), sf_ln_b=zeros((1, D)),
        sf_w1=nrm((D, FF)), sf_b1=zeros((1, FF)), sf_w2=nrm((FF, D)), sf_b2=zeros((1, D)),
        hd_ln_g=ones((1, D)), hd_ln_b=zeros((1, D)),
        hd_w1=nrm((D, D)), hd_b1=zeros((1, D)),
        hd_w2=nrm((D, NUM_OUT)), hd_b2=zeros((1, NUM_OUT)),
    )
    return p


# ---------------- pure-JAX reference (per-sample, unfused weights) ---------------------
# Mirrors the kernel's numerics: weight matmuls use bf16 operands with f32 accumulation
# (frozen pretrained weights stored in bf16); LN / softmax / residuals stay f32.
def _attend_ref(q, k, v, mask_row=None):
    scale = float(q.shape[-1]) ** -0.5
    logits = _dot(q, k.T) * scale
    if mask_row is not None:
        logits = jnp.where(mask_row > 0.5, logits, NEG_INF)
    mx = jnp.max(logits, axis=-1, keepdims=True)
    p = jnp.exp(logits - mx)
    p = p / jnp.sum(p, axis=-1, keepdims=True)
    return _dot(p, v)


def _forward_single_ref(x, mrow, p):
    lat = p["latents"]
    lat_n = _layernorm(lat, p["ca_lnq_g"], p["ca_lnq_b"])
    x_n = _layernorm(x, p["ca_lnkv_g"], p["ca_lnkv_b"])
    q = _bf16_dot(lat_n, p["ca_wq"])
    k = _bf16_dot(x_n, p["ca_wk"])
    v = _bf16_dot(x_n, p["ca_wv"])
    lat = lat + _bf16_dot(_attend_ref(q, k, v, mrow), p["ca_wo"])

    h = _layernorm(lat, p["cf_ln_g"], p["cf_ln_b"])
    lat = lat + _bf16_dot(_gelu(_bf16_dot(h, p["cf_w1"]) + p["cf_b1"]), p["cf_w2"]) + p["cf_b2"]

    ln = _layernorm(lat, p["sa_ln_g"], p["sa_ln_b"])
    q = _bf16_dot(ln, p["sa_wq"])
    k = _bf16_dot(ln, p["sa_wk"])
    v = _bf16_dot(ln, p["sa_wv"])
    heads = []
    for hh in range(LATENT_HEADS):
        lo, hi = hh * LATENT_DIM_HEAD, (hh + 1) * LATENT_DIM_HEAD
        heads.append(_attend_ref(q[:, lo:hi], k[:, lo:hi], v[:, lo:hi]))
    lat = lat + _bf16_dot(jnp.concatenate(heads, axis=-1), p["sa_wo"])

    h = _layernorm(lat, p["sf_ln_g"], p["sf_ln_b"])
    lat = lat + _bf16_dot(_gelu(_bf16_dot(h, p["sf_w1"]) + p["sf_b1"]), p["sf_w2"]) + p["sf_b2"]

    pooled = jnp.mean(lat, axis=0, keepdims=True)
    pn = _layernorm(pooled, p["hd_ln_g"], p["hd_ln_b"])
    pn = jnp.maximum(_bf16_dot(pn, p["hd_w1"]) + p["hd_b1"], 0.0)
    return _bf16_dot(pn, p["hd_w2"]) + p["hd_b2"]


def reference_forward(x, edge_mask, params):
    p = {n: params[n] for n in PARAM_ORDER}

    def single(xb, mb):
        return _forward_single_ref(xb, mb.astype(jnp.float32)[None, :], p)[0]

    return jax.vmap(single)(x, edge_mask)


# ---------------- main -----------------------------------------------------------------
if __name__ == "__main__":
    key = jax.random.PRNGKey(0)
    kparam, k1, k2, k3, k4 = jax.random.split(key, 5)
    params = init_params(kparam)
    w_slab, v_slab, aux_slab = pack_params(params)

    # inputs implied by the PyTorch forward:
    #   node_features        (bs, num_nodes, num_node_feat)        int
    #   node_preprocess_feat (bs, num_nodes, num_node_pre_feat)    float
    #   edge_index           (bs, num_edges, 2)                    int
    #   edge_features        (bs, num_edges, num_edge_feat)        int
    #   X_mask = (node_mask (bs, num_nodes), edge_mask (bs, num_edges))
    node_features = jax.random.randint(k1, (BATCH, NUM_NODES, N_ATOM_FEATS), 0, ATOM_VOCAB)
    node_preprocess_feat = jax.random.normal(k2, (BATCH, NUM_NODES, NODE_PRE_DIM), jnp.float32)
    edge_index = jax.random.randint(k3, (BATCH, NUM_EDGES, 2), 0, NUM_NODES)
    edge_features = jax.random.randint(k4, (BATCH, NUM_EDGES, N_BOND_FEATS), 0, BOND_VOCAB)
    node_mask = jnp.ones((BATCH, NUM_NODES), dtype=bool)  # unused by this forward (matches PyTorch)
    edge_mask = jnp.arange(NUM_EDGES)[None, :] < jnp.array([NUM_EDGES, NUM_EDGES - 4])[:, None]

    # JAX glue: encoders + edge-endpoint gather -> (bs, E, INPUT_DIM) edge tokens
    x = build_edge_tokens(node_features, node_preprocess_feat, edge_index, edge_features, params)

    # Pallas kernel: perceiver + mean-pool + transfer head (single invocation, batch folded)
    out = jax.block_until_ready(perceiver_transfer_pallas(x, edge_mask, w_slab, v_slab, aux_slab))

    with jax.default_matmul_precision("highest"):
        ref = jax.block_until_ready(reference_forward(x, edge_mask, params))

    assert out.shape == (BATCH, 2), out.shape
    # kernel and reference share the same bf16-weight / f32-accumulate numerics, so agreement
    # is well inside this tolerance; any structural bug produces >>1e-2 deviations.
    assert jnp.allclose(out, ref, rtol=3e-3, atol=3e-3), (out, ref)
    print("KERNEL_OK")
</pallas_src>

<mosaic_0001>
module attributes {stable_mosaic.version = 11 : i64} {
  func.func @perceiver_transfer_kernel(%arg0: i32, %arg1: memref<32x64xf32, #tpu.memory_space<vmem>>, %arg2: memref<16x32xf32, #tpu.memory_space<vmem>>, %arg3: memref<576x128xbf16, #tpu.memory_space<vmem>>, %arg4: memref<24x128xf32, #tpu.memory_space<vmem>>, %arg5: memref<40x128xf32, #tpu.memory_space<vmem>>, %arg6: memref<2x128xf32, #tpu.memory_space<vmem>>) attributes {dimension_semantics = [#tpu.dimension_semantics<arbitrary>], iteration_bounds = array<i64: 1>, scalar_prefetch = 0 : i64, scratch_operands = 0 : i64, tpu.core_type = #tpu.core_type<tc>, window_params = [{pipeline_mode = #tpu.pipeline_mode<synchronous>, transform_indices = @transform_0, window_bounds = array<i64: 32, 64>}, {pipeline_mode = #tpu.pipeline_mode<synchronous>, transform_indices = @transform_1, window_bounds = array<i64: 16, 32>}, {pipeline_mode = #tpu.pipeline_mode<synchronous>, transform_indices = @transform_2, window_bounds = array<i64: 576, 128>}, {pipeline_mode = #tpu.pipeline_mode<synchronous>, transform_indices = @transform_3, window_bounds = array<i64: 24, 128>}, {pipeline_mode = #tpu.pipeline_mode<synchronous>, transform_indices = @transform_4, window_bounds = array<i64: 40, 128>}, {pipeline_mode = #tpu.pipeline_mode<synchronous>, transform_indices = @transform_5, window_bounds = array<i64: 2, 128>}]} {
    %c0 = arith.constant 0 : index
    %c0_0 = arith.constant 0 : index
    %0 = vector.load %arg1[%c0, %c0_0] : memref<32x64xf32, #tpu.memory_space<vmem>>, vector<32x64xf32>
    %c0_1 = arith.constant 0 : index
    %c0_2 = arith.constant 0 : index
    %1 = vector.load %arg2[%c0_1, %c0_2] : memref<16x32xf32, #tpu.memory_space<vmem>>, vector<16x32xf32>
    %c16 = arith.constant 16 : index
    %c0_3 = arith.constant 0 : index
    %2 = vector.load %arg5[%c16, %c0_3] : memref<40x128xf32, #tpu.memory_space<vmem>>, vector<16x16xf32>
    %c32 = arith.constant 32 : index
    %c0_4 = arith.constant 0 : index
    %3 = vector.load %arg5[%c32, %c0_4] : memref<40x128xf32, #tpu.memory_space<vmem>>, vector<2x16xf32>
    %c0_5 = arith.constant 0 : index
    %c0_6 = arith.constant 0 : index
    %4 = vector.load %arg5[%c0_5, %c0_6] : memref<40x128xf32, #tpu.memory_space<vmem>>, vector<16x32xf32>
    %c0_7 = arith.constant 0 : index
    %c0_8 = arith.constant 0 : index
    %5 = vector.load %arg4[%c0_7, %c0_8] : memref<24x128xf32, #tpu.memory_space<vmem>>, vector<1x32xf32>
    %c1 = arith.constant 1 : index
    %c0_9 = arith.constant 0 : index
    %6 = vector.load %arg4[%c1, %c0_9] : memref<24x128xf32, #tpu.memory_space<vmem>>, vector<1x32xf32>
    %cst = arith.constant dense<0.000000e+00> : vector<16xf32>
    %7 = vector.multi_reduction <add>, %4, %cst [1] : vector<16x32xf32> to vector<16xf32>
    %8 = vector.shape_cast %7 : vector<16xf32> to vector<16x1xf32>
    %cst_10 = arith.constant 3.200000e+01 : f32
    %9 = vector.broadcast %cst_10 : f32 to vector<16x1xf32>
    %10 = arith.divf %8, %9 : vector<16x1xf32>
    %11 = arith.mulf %4, %4 : vector<16x32xf32>
    %cst_11 = arith.constant dense<0.000000e+00> : vector<16xf32>
    %12 = vector.multi_reduction <add>, %11, %cst_11 [1] : vector<16x32xf32> to vector<16xf32>
    %13 = vector.shape_cast %12 : vector<16xf32> to vector<16x1xf32>
    %cst_12 = arith.constant 3.200000e+01 : f32
    %14 = vector.broadcast %cst_12 : f32 to vector<16x1xf32>
    %15 = arith.divf %13, %14 : vector<16x1xf32>
    %16 = arith.mulf %10, %10 : vector<16x1xf32>
    %17 = arith.subf %15, %16 : vector<16x1xf32>
    %18 = vector.broadcast %10 : vector<16x1xf32> to vector<16x32xf32>
    %19 = arith.subf %4, %18 : vector<16x32xf32>
    %cst_13 = arith.constant 9.99999974E-6 : f32
    %20 = vector.broadcast %cst_13 : f32 to vector<16x1xf32>
    %21 = arith.addf %17, %20 : vector<16x1xf32>
    %22 = math.rsqrt %21 : vector<16x1xf32>
    %23 = vector.broadcast %22 : vector<16x1xf32> to vector<16x32xf32>
    %24 = arith.mulf %19, %23 : vector<16x32xf32>
    %25 = vector.broadcast %5 : vector<1x32xf32> to vector<16x32xf32>
    %26 = arith.mulf %24, %25 : vector<16x32xf32>
    %27 = vector.broadcast %6 : vector<1x32xf32> to vector<16x32xf32>
    %28 = arith.addf %26, %27 : vector<16x32xf32>
    %c2 = arith.constant 2 : index
    %c0_14 = arith.constant 0 : index
    %29 = vector.load %arg4[%c2, %c0_14] : memref<24x128xf32, #tpu.memory_space<vmem>>, vector<1x64xf32>
    %c3 = arith.constant 3 : index
    %c0_15 = arith.constant 0 : index
    %30 = vector.load %arg4[%c3, %c0_15] : memref<24x128xf32, #tpu.memory_space<vmem>>, vector<1x64xf32>
    %cst_16 = arith.constant dense<0.000000e+00> : vector<32xf32>
    %31 = vector.multi_reduction <add>, %0, %cst_16 [1] : vector<32x64xf32> to vector<32xf32>
    %32 = vector.shape_cast %31 : vector<32xf32> to vector<32x1xf32>
    %cst_17 = arith.constant 6.400000e+01 : f32
    %33 = vector.broadcast %cst_17 : f32 to vector<32x1xf32>
    %34 = arith.divf %32, %33 : vector<32x1xf32>
    %35 = arith.mulf %0, %0 : vector<32x64xf32>
    %cst_18 = arith.constant dense<0.000000e+00> : vector<32xf32>
    %36 = vector.multi_reduction <add>, %35, %cst_18 [1] : vector<32x64xf32> to vector<32xf32>
    %37 = vector.shape_cast %36 : vector<32xf32> to vector<32x1xf32>
    %cst_19 = arith.constant 6.400000e+01 : f32
    %38 = vector.broadcast %cst_19 : f32 to vector<32x1xf32>
    %39 = arith.divf %37, %38 : vector<32x1xf32>
    %40 = arith.mulf %34, %34 : vector<32x1xf32>
    %41 = arith.subf %39, %40 : vector<32x1xf32>
    %42 = vector.broadcast %34 : vector<32x1xf32> to vector<32x64xf32>
    %43 = arith.subf %0, %42 : vector<32x64xf32>
    %cst_20 = arith.constant 9.99999974E-6 : f32
    %44 = vector.broadcast %cst_20 : f32 to vector<32x1xf32>
    %45 = arith.addf %41, %44 : vector<32x1xf32>
    %46 = math.rsqrt %45 : vector<32x1xf32>
    %47 = vector.broadcast %46 : vector<32x1xf32> to vector<32x64xf32>
    %48 = arith.mulf %43, %47 : vector<32x64xf32>
    %49 = vector.broadcast %29 : vector<1x64xf32> to vector<32x64xf32>
    %50 = arith.mulf %48, %49 : vector<32x64xf32>
    %51 = vector.broadcast %30 : vector<1x64xf32> to vector<32x64xf32>
    %52 = arith.addf %50, %51 : vector<32x64xf32>
    %c0_21 = arith.constant 0 : index
    %c0_22 = arith.constant 0 : index
    %53 = vector.load %arg3[%c0_21, %c0_22] : memref<576x128xbf16, #tpu.memory_space<vmem>>, vector<32x32xbf16>
    %54 = arith.truncf %28 : vector<16x32xf32> to vector<16x32xbf16>
    %cst_23 = arith.constant dense<0.000000e+00> : vector<16x32xf32>
    %55 = tpu.matmul %54, %53, %cst_23 {dimension_numbers = #tpu.dot_dimension_numbers<[1], [0], [0], [1], [0, 0, 1, 1], [], []>} : vector<16x32xbf16>, vector<32x32xbf16>, vector<16x32xf32> -> vector<16x32xf32>
    %c32_24 = arith.constant 32 : index
    %c0_25 = arith.constant 0 : index
    %56 = vector.load %arg3[%c32_24, %c0_25] : memref<576x128xbf16, #tpu.memory_space<vmem>>, vector<64x64xbf16>
    %57 = arith.truncf %52 : vector<32x64xf32> to vector<32x64xbf16>
    %cst_26 = arith.constant dense<0.000000e+00> : vector<32x64xf32>
    %58 = tpu.matmul %57, %56, %cst_26 {dimension_numbers = #tpu.dot_dimension_numbers<[1], [0], [0], [1], [0, 0, 1, 1], [], []>} : vector<32x64xbf16>, vector<64x64xbf16>, vector<32x64xf32> -> vector<32x64xf32>
    %59 = vector.extract_strided_slice %58 {offsets = [0, 0], sizes = [32, 32], strides = [1, 1]} : vector<32x64xf32> to vector<32x32xf32>
    %60 = vector.extract_strided_slice %58 {offsets = [0, 32], sizes = [32, 32], strides = [1, 1]} : vector<32x64xf32> to vector<32x32xf32>
    %cst_27 = arith.constant dense<0.000000e+00> : vector<16x32xf32>
    %61 = tpu.matmul %55, %59, %cst_27 {dimension_numbers = #tpu.dot_dimension_numbers<[1], [1], [0], [0], [0, 0, 1, 0], [], []>} : vector<16x32xf32>, vector<32x32xf32>, vector<16x32xf32> -> vector<16x32xf32>
    %cst_28 = arith.constant 0.176776692 : f32
    %62 = vector.broadcast %cst_28 : f32 to vector<16x32xf32>
    %63 = arith.mulf %61, %62 : vector<16x32xf32>
    %64 = arith.addf %63, %1 : vector<16x32xf32>
    %cst_29 = arith.constant dense<0xFF800000> : vector<16xf32>
    %65 = vector.multi_reduction <maximumf>, %64, %cst_29 [1] : vector<16x32xf32> to vector<16xf32>
    %66 = vector.shape_cast %65 : vector<16xf32> to vector<16x1xf32>
    %67 = vector.broadcast %66 : vector<16x1xf32> to vector<16x32xf32>
    %68 = arith.subf %64, %67 : vector<16x32xf32>
    %69 = math.exp %68 : vector<16x32xf32>
    %cst_30 = arith.constant dense<0.000000e+00> : vector<16xf32>
    %70 = vector.multi_reduction <add>, %69, %cst_30 [1] : vector<16x32xf32> to vector<16xf32>
    %71 = vector.shape_cast %70 : vector<16xf32> to vector<16x1xf32>
    %72 = vector.broadcast %71 : vector<16x1xf32> to vector<16x32xf32>
    %73 = arith.divf %69, %72 : vector<16x32xf32>
    %cst_31 = arith.constant dense<0.000000e+00> : vector<16x32xf32>
    %74 = tpu.matmul %73, %60, %cst_31 {dimension_numbers = #tpu.dot_dimension_numbers<[1], [0], [0], [1], [0, 0, 1, 1], [], []>} : vector<16x32xf32>, vector<32x32xf32>, vector<16x32xf32> -> vector<16x32xf32>
    %c96 = arith.constant 96 : index
    %c0_32 = arith.constant 0 : index
    %75 = vector.load %arg3[%c96, %c0_32] : memref<576x128xbf16, #tpu.memory_space<vmem>>, vector<32x32xbf16>
    %76 = arith.truncf %74 : vector<16x32xf32> to vector<16x32xbf16>
    %cst_33 = arith.constant dense<0.000000e+00> : vector<16x32xf32>
    %77 = tpu.matmul %76, %75, %cst_33 {dimension_numbers = #tpu.dot_dimension_numbers<[1], [0], [0], [1], [0, 0, 1, 1], [], []>} : vector<16x32xbf16>, vector<32x32xbf16>, vector<16x32xf32> -> vector<16x32xf32>
    %78 = arith.addf %4, %77 : vector<16x32xf32>
    %c4 = arith.constant 4 : index
    %c0_34 = arith.constant 0 : index
    %79 = vector.load %arg4[%c4, %c0_34] : memref<24x128xf32, #tpu.memory_space<vmem>>, vector<1x32xf32>
    %c5 = arith.constant 5 : index
    %c0_35 = arith.constant 0 : index
    %80 = vector.load %arg4[%c5, %c0_35] : memref<24x128xf32, #tpu.memory_space<vmem>>, vector<1x32xf32>
    %cst_36 = arith.constant dense<0.000000e+00> : vector<16xf32>
    %81 = vector.multi_reduction <add>, %78, %cst_36 [1] : vector<16x32xf32> to vector<16xf32>
    %82 = vector.shape_cast %81 : vector<16xf32> to vector<16x1xf32>
    %cst_37 = arith.constant 3.200000e+01 : f32
    %83 = vector.broadcast %cst_37 : f32 to vector<16x1xf32>
    %84 = arith.divf %82, %83 : vector<16x1xf32>
    %85 = arith.mulf %78, %78 : vector<16x32xf32>
    %cst_38 = arith.constant dense<0.000000e+00> : vector<16xf32>
    %86 = vector.multi_reduction <add>, %85, %cst_38 [1] : vector<16x32xf32> to vector<16xf32>
    %87 = vector.shape_cast %86 : vector<16xf32> to vector<16x1xf32>
    %cst_39 = arith.constant 3.200000e+01 : f32
    %88 = vector.broadcast %cst_39 : f32 to vector<16x1xf32>
    %89 = arith.divf %87, %88 : vector<16x1xf32>
    %90 = arith.mulf %84, %84 : vector<16x1xf32>
    %91 = arith.subf %89, %90 : vector<16x1xf32>
    %92 = vector.broadcast %84 : vector<16x1xf32> to vector<16x32xf32>
    %93 = arith.subf %78, %92 : vector<16x32xf32>
    %cst_40 = arith.constant 9.99999974E-6 : f32
    %94 = vector.broadcast %cst_40 : f32 to vector<16x1xf32>
    %95 = arith.addf %91, %94 : vector<16x1xf32>
    %96 = math.rsqrt %95 : vector<16x1xf32>
    %97 = vector.broadcast %96 : vector<16x1xf32> to vector<16x32xf32>
    %98 = arith.mulf %93, %97 : vector<16x32xf32>
    %99 = vector.broadcast %79 : vector<1x32xf32> to vector<16x32xf32>
    %100 = arith.mulf %98, %99 : vector<16x32xf32>
    %101 = vector.broadcast %80 : vector<1x32xf32> to vector<16x32xf32>
    %102 = arith.addf %100, %101 : vector<16x32xf32>
    %c128 = arith.constant 128 : index
    %c0_41 = arith.constant 0 : index
    %103 = vector.load %arg3[%c128, %c0_41] : memref<576x128xbf16, #tpu.memory_space<vmem>>, vector<32x128xbf16>
    %104 = arith.truncf %102 : vector<16x32xf32> to vector<16x32xbf16>
    %cst_42 = arith.constant dense<0.000000e+00> : vector<16x128xf32>
    %105 = tpu.matmul %104, %103, %cst_42 {dimension_numbers = #tpu.dot_dimension_numbers<[1], [0], [0], [1], [0, 0, 1, 1], [], []>} : vector<16x32xbf16>, vector<32x128xbf16>, vector<16x128xf32> -> vector<16x128xf32>
    %c6 = arith.constant 6 : index
    %c0_43 = arith.constant 0 : index
    %106 = vector.load %arg4[%c6, %c0_43] : memref<24x128xf32, #tpu.memory_space<vmem>>, vector<1x128xf32>
    %107 = vector.broadcast %106 : vector<1x128xf32> to vector<16x128xf32>
    %108 = arith.addf %105, %107 : vector<16x128xf32>
    %cst_44 = arith.constant 5.000000e-01 : f32
    %109 = vector.broadcast %cst_44 : f32 to vector<16x128xf32>
    %110 = arith.mulf %109, %108 : vector<16x128xf32>
    %cst_45 = arith.constant 4.471500e-02 : f32
    %111 = vector.broadcast %cst_45 : f32 to vector<16x128xf32>
    %112 = arith.mulf %111, %108 : vector<16x128xf32>
    %113 = arith.mulf %112, %108 : vector<16x128xf32>
    %114 = arith.mulf %113, %108 : vector<16x128xf32>
    %115 = arith.addf %108, %114 : vector<16x128xf32>
    %cst_46 = arith.constant 0.797884583 : f32
    %116 = vector.broadcast %cst_46 : f32 to vector<16x128xf32>
    %117 = arith.mulf %116, %115 : vector<16x128xf32>
    %118 = math.tanh %117 : vector<16x128xf32>
    %cst_47 = arith.constant 1.000000e+00 : f32
    %119 = vector.broadcast %cst_47 : f32 to vector<16x128xf32>
    %120 = arith.addf %119, %118 : vector<16x128xf32>
    %121 = arith.mulf %110, %120 : vector<16x128xf32>
    %c160 = arith.constant 160 : index
    %c0_48 = arith.constant 0 : index
    %122 = vector.load %arg3[%c160, %c0_48] : memref<576x128xbf16, #tpu.memory_space<vmem>>, vector<128x32xbf16>
    %123 = arith.truncf %121 : vector<16x128xf32> to vector<16x128xbf16>
    %cst_49 = arith.constant dense<0.000000e+00> : vector<16x32xf32>
    %124 = tpu.matmul %123, %122, %cst_49 {dimension_numbers = #tpu.dot_dimension_numbers<[1], [0], [0], [1], [0, 0, 1, 1], [], []>} : vector<16x128xbf16>, vector<128x32xbf16>, vector<16x32xf32> -> vector<16x32xf32>
    %125 = arith.addf %78, %124 : vector<16x32xf32>
    %c7 = arith.constant 7 : index
    %c0_50 = arith.constant 0 : index
    %126 = vector.load %arg4[%c7, %c0_50] : memref<24x128xf32, #tpu.memory_space<vmem>>, vector<1x32xf32>
    %127 = vector.broadcast %126 : vector<1x32xf32> to vector<16x32xf32>
    %128 = arith.addf %125, %127 : vector<16x32xf32>
    %c8 = arith.constant 8 : index
    %c0_51 = arith.constant 0 : index
    %129 = vector.load %arg4[%c8, %c0_51] : memref<24x128xf32, #tpu.memory_space<vmem>>, vector<1x32xf32>
    %c9 = arith.constant 9 : index
    %c0_52 = arith.constant 0 : index
    %130 = vector.load %arg4[%c9, %c0_52] : memref<24x128xf32, #tpu.memory_space<vmem>>, vector<1x32xf32>
    %cst_53 = arith.constant dense<0.000000e+00> : vector<16xf32>
    %131 = vector.multi_reduction <add>, %128, %cst_53 [1] : vector<16x32xf32> to vector<16xf32>
    %132 = vector.shape_cast %131 : vector<16xf32> to vector<16x1xf32>
    %cst_54 = arith.constant 3.200000e+01 : f32
    %133 = vector.broadcast %cst_54 : f32 to vector<16x1xf32>
    %134 = arith.divf %132, %133 : vector<16x1xf32>
    %135 = arith.mulf %128, %128 : vector<16x32xf32>
    %cst_55 = arith.constant dense<0.000000e+00> : vector<16xf32>
    %136 = vector.multi_reduction <add>, %135, %cst_55 [1] : vector<16x32xf32> to vector<16xf32>
    %137 = vector.shape_cast %136 : vector<16xf32> to vector<16x1xf32>
    %cst_56 = arith.constant 3.200000e+01 : f32
    %138 = vector.broadcast %cst_56 : f32 to vector<16x1xf32>
    %139 = arith.divf %137, %138 : vector<16x1xf32>
    %140 = arith.mulf %134, %134 : vector<16x1xf32>
    %141 = arith.subf %139, %140 : vector<16x1xf32>
    %142 = vector.broadcast %134 : vector<16x1xf32> to vector<16x32xf32>
    %143 = arith.subf %128, %142 : vector<16x32xf32>
    %cst_57 = arith.constant 9.99999974E-6 : f32
    %144 = vector.broadcast %cst_57 : f32 to vector<16x1xf32>
    %145 = arith.addf %141, %144 : vector<16x1xf32>
    %146 = math.rsqrt %145 : vector<16x1xf32>
    %147 = vector.broadcast %146 : vector<16x1xf32> to vector<16x32xf32>
    %148 = arith.mulf %143, %147 : vector<16x32xf32>
    %149 = vector.broadcast %129 : vector<1x32xf32> to vector<16x32xf32>
    %150 = arith.mulf %148, %149 : vector<16x32xf32>
    %151 = vector.broadcast %130 : vector<1x32xf32> to vector<16x32xf32>
    %152 = arith.addf %150, %151 : vector<16x32xf32>
    %c288 = arith.constant 288 : index
    %c0_58 = arith.constant 0 : index
    %153 = vector.load %arg3[%c288, %c0_58] : memref<576x128xbf16, #tpu.memory_space<vmem>>, vector<32x96xbf16>
    %154 = arith.truncf %152 : vector<16x32xf32> to vector<16x32xbf16>
    %cst_59 = arith.constant dense<0.000000e+00> : vector<16x96xf32>
    %155 = tpu.matmul %154, %153, %cst_59 {dimension_numbers = #tpu.dot_dimension_numbers<[1], [0], [0], [1], [0, 0, 1, 1], [], []>} : vector<16x32xbf16>, vector<32x96xbf16>, vector<16x96xf32> -> vector<16x96xf32>
    %156 = vector.extract_strided_slice %155 {offsets = [0, 0], sizes = [16, 16], strides = [1, 1]} : vector<16x96xf32> to vector<16x16xf32>
    %157 = vector.extract_strided_slice %155 {offsets = [0, 32], sizes = [16, 16], strides = [1, 1]} : vector<16x96xf32> to vector<16x16xf32>
    %158 = vector.extract_strided_slice %155 {offsets = [0, 64], sizes = [16, 16], strides = [1, 1]} : vector<16x96xf32> to vector<16x16xf32>
    %cst_60 = arith.constant dense<0.000000e+00> : vector<16x16xf32>
    %159 = tpu.matmul %156, %157, %cst_60 {dimension_numbers = #tpu.dot_dimension_numbers<[1], [1], [0], [0], [0, 0, 1, 0], [], []>} : vector<16x16xf32>, vector<16x16xf32>, vector<16x16xf32> -> vector<16x16xf32>
    %cst_61 = arith.constant 2.500000e-01 : f32
    %160 = vector.broadcast %cst_61 : f32 to vector<16x16xf32>
    %161 = arith.mulf %159, %160 : vector<16x16xf32>
    %162 = arith.addf %161, %2 : vector<16x16xf32>
    %cst_62 = arith.constant dense<0xFF800000> : vector<16xf32>
    %163 = vector.multi_reduction <maximumf>, %162, %cst_62 [1] : vector<16x16xf32> to vector<16xf32>
    %164 = vector.shape_cast %163 : vector<16xf32> to vector<16x1xf32>
    %165 = vector.broadcast %164 : vector<16x1xf32> to vector<16x16xf32>
    %166 = arith.subf %162, %165 : vector<16x16xf32>
    %167 = math.exp %166 : vector<16x16xf32>
    %cst_63 = arith.constant dense<0.000000e+00> : vector<16xf32>
    %168 = vector.multi_reduction <add>, %167, %cst_63 [1] : vector<16x16xf32> to vector<16xf32>
    %169 = vector.shape_cast %168 : vector<16xf32> to vector<16x1xf32>
    %170 = vector.broadcast %169 : vector<16x1xf32> to vector<16x16xf32>
    %171 = arith.divf %167, %170 : vector<16x16xf32>
    %cst_64 = arith.constant dense<0.000000e+00> : vector<16x16xf32>
    %172 = tpu.matmul %171, %158, %cst_64 {dimension_numbers = #tpu.dot_dimension_numbers<[1], [0], [0], [1], [0, 0, 1, 1], [], []>} : vector<16x16xf32>, vector<16x16xf32>, vector<16x16xf32> -> vector<16x16xf32>
    %173 = vector.extract_strided_slice %155 {offsets = [0, 16], sizes = [16, 16], strides = [1, 1]} : vector<16x96xf32> to vector<16x16xf32>
    %174 = vector.extract_strided_slice %155 {offsets = [0, 48], sizes = [16, 16], strides = [1, 1]} : vector<16x96xf32> to vector<16x16xf32>
    %175 = vector.extract_strided_slice %155 {offsets = [0, 80], sizes = [16, 16], strides = [1, 1]} : vector<16x96xf32> to vector<16x16xf32>
    %cst_65 = arith.constant dense<0.000000e+00> : vector<16x16xf32>
    %176 = tpu.matmul %173, %174, %cst_65 {dimension_numbers = #tpu.dot_dimension_numbers<[1], [1], [0], [0], [0, 0, 1, 0], [], []>} : vector<16x16xf32>, vector<16x16xf32>, vector<16x16xf32> -> vector<16x16xf32>
    %cst_66 = arith.constant 2.500000e-01 : f32
    %177 = vector.broadcast %cst_66 : f32 to vector<16x16xf32>
    %178 = arith.mulf %176, %177 : vector<16x16xf32>
    %179 = arith.addf %178, %2 : vector<16x16xf32>
    %cst_67 = arith.constant dense<0xFF800000> : vector<16xf32>
    %180 = vector.multi_reduction <maximumf>, %179, %cst_67 [1] : vector<16x16xf32> to vector<16xf32>
    %181 = vector.shape_cast %180 : vector<16xf32> to vector<16x1xf32>
    %182 = vector.broadcast %181 : vector<16x1xf32> to vector<16x16xf32>
    %183 = arith.subf %179, %182 : vector<16x16xf32>
    %184 = math.exp %183 : vector<16x16xf32>
    %cst_68 = arith.constant dense<0.000000e+00> : vector<16xf32>
    %185 = vector.multi_reduction <add>, %184, %cst_68 [1] : vector<16x16xf32> to vector<16xf32>
    %186 = vector.shape_cast %185 : vector<16xf32> to vector<16x1xf32>
    %187 = vector.broadcast %186 : vector<16x1xf32> to vector<16x16xf32>
    %188 = arith.divf %184, %187 : vector<16x16xf32>
    %cst_69 = arith.constant dense<0.000000e+00> : vector<16x16xf32>
    %189 = tpu.matmul %188, %175, %cst_69 {dimension_numbers = #tpu.dot_dimension_numbers<[1], [0], [0], [1], [0, 0, 1, 1], [], []>} : vector<16x16xf32>, vector<16x16xf32>, vector<16x16xf32> -> vector<16x16xf32>
    %190 = tpu.concatenate %172, %189 in 1 : vector<16x16xf32>, vector<16x16xf32> -> vector<16x32xf32>
    %c320 = arith.constant 320 : index
    %c0_70 = arith.constant 0 : index
    %191 = vector.load %arg3[%c320, %c0_70] : memref<576x128xbf16, #tpu.memory_space<vmem>>, vector<32x32xbf16>
    %192 = arith.truncf %190 : vector<16x32xf32> to vector<16x32xbf16>
    %cst_71 = arith.constant dense<0.000000e+00> : vector<16x32xf32>
    %193 = tpu.matmul %192, %191, %cst_71 {dimension_numbers = #tpu.dot_dimension_numbers<[1], [0], [0], [1], [0, 0, 1, 1], [], []>} : vector<16x32xbf16>, vector<32x32xbf16>, vector<16x32xf32> -> vector<16x32xf32>
    %194 = arith.addf %128, %193 : vector<16x32xf32>
    %c10 = arith.constant 10 : index
    %c0_72 = arith.constant 0 : index
    %195 = vector.load %arg4[%c10, %c0_72] : memref<24x128xf32, #tpu.memory_space<vmem>>, vector<1x32xf32>
    %c11 = arith.constant 11 : index
    %c0_73 = arith.constant 0 : index
    %196 = vector.load %arg4[%c11, %c0_73] : memref<24x128xf32, #tpu.memory_space<vmem>>, vector<1x32xf32>
    %cst_74 = arith.constant dense<0.000000e+00> : vector<16xf32>
    %197 = vector.multi_reduction <add>, %194, %cst_74 [1] : vector<16x32xf32> to vector<16xf32>
    %198 = vector.shape_cast %197 : vector<16xf32> to vector<16x1xf32>
    %cst_75 = arith.constant 3.200000e+01 : f32
    %199 = vector.broadcast %cst_75 : f32 to vector<16x1xf32>
    %200 = arith.divf %198, %199 : vector<16x1xf32>
    %201 = arith.mulf %194, %194 : vector<16x32xf32>
    %cst_76 = arith.constant dense<0.000000e+00> : vector<16xf32>
    %202 = vector.multi_reduction <add>, %201, %cst_76 [1] : vector<16x32xf32> to vector<16xf32>
    %203 = vector.shape_cast %202 : vector<16xf32> to vector<16x1xf32>
    %cst_77 = arith.constant 3.200000e+01 : f32
    %204 = vector.broadcast %cst_77 : f32 to vector<16x1xf32>
    %205 = arith.divf %203, %204 : vector<16x1xf32>
    %206 = arith.mulf %200, %200 : vector<16x1xf32>
    %207 = arith.subf %205, %206 : vector<16x1xf32>
    %208 = vector.broadcast %200 : vector<16x1xf32> to vector<16x32xf32>
    %209 = arith.subf %194, %208 : vector<16x32xf32>
    %cst_78 = arith.constant 9.99999974E-6 : f32
    %210 = vector.broadcast %cst_78 : f32 to vector<16x1xf32>
    %211 = arith.addf %207, %210 : vector<16x1xf32>
    %212 = math.rsqrt %211 : vector<16x1xf32>
    %213 = vector.broadcast %212 : vector<16x1xf32> to vector<16x32xf32>
    %214 = arith.mulf %209, %213 : vector<16x32xf32>
    %215 = vector.broadcast %195 : vector<1x32xf32> to vector<16x32xf32>
    %216 = arith.mulf %214, %215 : vector<16x32xf32>
    %217 = vector.broadcast %196 : vector<1x32xf32> to vector<16x32xf32>
    %218 = arith.addf %216, %217 : vector<16x32xf32>
    %c352 = arith.constant 352 : index
    %c0_79 = arith.constant 0 : index
    %219 = vector.load %arg3[%c352, %c0_79] : memref<576x128xbf16, #tpu.memory_space<vmem>>, vector<32x128xbf16>
    %220 = arith.truncf %218 : vector<16x32xf32> to vector<16x32xbf16>
    %cst_80 = arith.constant dense<0.000000e+00> : vector<16x128xf32>
    %221 = tpu.matmul %220, %219, %cst_80 {dimension_numbers = #tpu.dot_dimension_numbers<[1], [0], [0], [1], [0, 0, 1, 1], [], []>} : vector<16x32xbf16>, vector<32x128xbf16>, vector<16x128xf32> -> vector<16x128xf32>
    %c12 = arith.constant 12 : index
    %c0_81 = arith.constant 0 : index
    %222 = vector.load %arg4[%c12, %c0_81] : memref<24x128xf32, #tpu.memory_space<vmem>>, vector<1x128xf32>
    %223 = vector.broadcast %222 : vector<1x128xf32> to vector<16x128xf32>
    %224 = arith.addf %221, %223 : vector<16x128xf32>
    %cst_82 = arith.constant 5.000000e-01 : f32
    %225 = vector.broadcast %cst_82 : f32 to vector<16x128xf32>
    %226 = arith.mulf %225, %224 : vector<16x128xf32>
    %cst_83 = arith.constant 4.471500e-02 : f32
    %227 = vector.broadcast %cst_83 : f32 to vector<16x128xf32>
    %228 = arith.mulf %227, %224 : vector<16x128xf32>
    %229 = arith.mulf %228, %224 : vector<16x128xf32>
    %230 = arith.mulf %229, %224 : vector<16x128xf32>
    %231 = arith.addf %224, %230 : vector<16x128xf32>
    %cst_84 = arith.constant 0.797884583 : f32
    %232 = vector.broadcast %cst_84 : f32 to vector<16x128xf32>
    %233 = arith.mulf %232, %231 : vector<16x128xf32>
    %234 = math.tanh %233 : vector<16x128xf32>
    %cst_85 = arith.constant 1.000000e+00 : f32
    %235 = vector.broadcast %cst_85 : f32 to vector<16x128xf32>
    %236 = arith.addf %235, %234 : vector<16x128xf32>
    %237 = arith.mulf %226, %236 : vector<16x128xf32>
    %c384 = arith.constant 384 : index
    %c0_86 = arith.constant 0 : index
    %238 = vector.load %arg3[%c384, %c0_86] : memref<576x128xbf16, #tpu.memory_space<vmem>>, vector<128x32xbf16>
    %239 = arith.truncf %237 : vector<16x128xf32> to vector<16x128xbf16>
    %cst_87 = arith.constant dense<0.000000e+00> : vector<16x32xf32>
    %240 = tpu.matmul %239, %238, %cst_87 {dimension_numbers = #tpu.dot_dimension_numbers<[1], [0], [0], [1], [0, 0, 1, 1], [], []>} : vector<16x128xbf16>, vector<128x32xbf16>, vector<16x32xf32> -> vector<16x32xf32>
    %241 = arith.addf %194, %240 : vector<16x32xf32>
    %c13 = arith.constant 13 : index
    %c0_88 = arith.constant 0 : index
    %242 = vector.load %arg4[%c13, %c0_88] : memref<24x128xf32, #tpu.memory_space<vmem>>, vector<1x32xf32>
    %243 = vector.broadcast %242 : vector<1x32xf32> to vector<16x32xf32>
    %244 = arith.addf %241, %243 : vector<16x32xf32>
    %cst_89 = arith.constant dense<0.000000e+00> : vector<2x32xf32>
    %245 = tpu.matmul %3, %244, %cst_89 {dimension_numbers = #tpu.dot_dimension_numbers<[1], [0], [0], [1], [0, 0, 1, 1], [], []>} : vector<2x16xf32>, vector<16x32xf32>, vector<2x32xf32> -> vector<2x32xf32>
    %c14 = arith.constant 14 : index
    %c0_90 = arith.constant 0 : index
    %246 = vector.load %arg4[%c14, %c0_90] : memref<24x128xf32, #tpu.memory_space<vmem>>, vector<1x32xf32>
    %c15 = arith.constant 15 : index
    %c0_91 = arith.constant 0 : index
    %247 = vector.load %arg4[%c15, %c0_91] : memref<24x128xf32, #tpu.memory_space<vmem>>, vector<1x32xf32>
    %cst_92 = arith.constant dense<0.000000e+00> : vector<2xf32>
    %248 = vector.multi_reduction <add>, %245, %cst_92 [1] : vector<2x32xf32> to vector<2xf32>
    %249 = vector.shape_cast %248 : vector<2xf32> to vector<2x1xf32>
    %cst_93 = arith.constant 3.200000e+01 : f32
    %250 = vector.broadcast %cst_93 : f32 to vector<2x1xf32>
    %251 = arith.divf %249, %250 : vector<2x1xf32>
    %252 = arith.mulf %245, %245 : vector<2x32xf32>
    %cst_94 = arith.constant dense<0.000000e+00> : vector<2xf32>
    %253 = vector.multi_reduction <add>, %252, %cst_94 [1] : vector<2x32xf32> to vector<2xf32>
    %254 = vector.shape_cast %253 : vector<2xf32> to vector<2x1xf32>
    %cst_95 = arith.constant 3.200000e+01 : f32
    %255 = vector.broadcast %cst_95 : f32 to vector<2x1xf32>
    %256 = arith.divf %254, %255 : vector<2x1xf32>
    %257 = arith.mulf %251, %251 : vector<2x1xf32>
    %258 = arith.subf %256, %257 : vector<2x1xf32>
    %259 = vector.broadcast %251 : vector<2x1xf32> to vector<2x32xf32>
    %260 = arith.subf %245, %259 : vector<2x32xf32>
    %cst_96 = arith.constant 9.99999974E-6 : f32
    %261 = vector.broadcast %cst_96 : f32 to vector<2x1xf32>
    %262 = arith.addf %258, %261 : vector<2x1xf32>
    %263 = math.rsqrt %262 : vector<2x1xf32>
    %264 = vector.broadcast %263 : vector<2x1xf32> to vector<2x32xf32>
    %265 = arith.mulf %260, %264 : vector<2x32xf32>
    %266 = vector.broadcast %246 : vector<1x32xf32> to vector<2x32xf32>
    %267 = arith.mulf %265, %266 : vector<2x32xf32>
    %268 = vector.broadcast %247 : vector<1x32xf32> to vector<2x32xf32>
    %269 = arith.addf %267, %268 : vector<2x32xf32>
    %c512 = arith.constant 512 : index
    %c0_97 = arith.constant 0 : index
    %270 = vector.load %arg3[%c512, %c0_97] : memref<576x128xbf16, #tpu.memory_space<vmem>>, vector<32x32xbf16>
    %271 = arith.truncf %269 : vector<2x32xf32> to vector<2x32xbf16>
    %cst_98 = arith.constant dense<0.000000e+00> : vector<2x32xf32>
    %272 = tpu.matmul %271, %270, %cst_98 {dimension_numbers = #tpu.dot_dimension_numbers<[1], [0], [0], [1], [0, 0, 1, 1], [], []>} : vector<2x32xbf16>, vector<32x32xbf16>, vector<2x32xf32> -> vector<2x32xf32>
    %c16_99 = arith.constant 16 : index
    %c0_100 = arith.constant 0 : index
    %273 = vector.load %arg4[%c16_99, %c0_100] : memref<24x128xf32, #tpu.memory_space<vmem>>, vector<1x32xf32>
    %274 = vector.broadcast %273 : vector<1x32xf32> to vector<2x32xf32>
    %275 = arith.addf %272, %274 : vector<2x32xf32>
    %cst_101 = arith.constant 0.000000e+00 : f32
    %276 = vector.broadcast %cst_101 : f32 to vector<2x32xf32>
    %277 = arith.maximumf %275, %276 : vector<2x32xf32>
    %c544 = arith.constant 544 : index
    %c0_102 = arith.constant 0 : index
    %278 = vector.load %arg3[%c544, %c0_102] : memref<576x128xbf16, #tpu.memory_space<vmem>>, vector<32x128xbf16>
    %279 = arith.truncf %277 : vector<2x32xf32> to vector<2x32xbf16>
    %cst_103 = arith.constant dense<0.000000e+00> : vector<2x128xf32>
    %280 = tpu.matmul %279, %278, %cst_103 {dimension_numbers = #tpu.dot_dimension_numbers<[1], [0], [0], [1], [0, 0, 1, 1], [], []>} : vector<2x32xbf16>, vector<32x128xbf16>, vector<2x128xf32> -> vector<2x128xf32>
    %c17 = arith.constant 17 : index
    %c0_104 = arith.constant 0 : index
    %281 = vector.load %arg4[%c17, %c0_104] : memref<24x128xf32, #tpu.memory_space<vmem>>, vector<1x128xf32>
    %282 = vector.broadcast %281 : vector<1x128xf32> to vector<2x128xf32>
    %283 = arith.addf %280, %282 : vector<2x128xf32>
    %c0_105 = arith.constant 0 : index
    %c0_106 = arith.constant 0 : index
    %284 = vector.load %arg6[%c0_105, %c0_106] : memref<2x128xf32, #tpu.memory_space<vmem>>, vector<2x128xf32>
    tpu.vector_store %arg6[%c0_105, %c0_106], %283 {strides = array<i32>} : memref<2x128xf32, #tpu.memory_space<vmem>>, vector<2x128xf32>,
    return
  }
  func.func @transform_0(%arg0: i32) -> (i32, i32) {
    %c0_i32 = arith.constant 0 : i32
    %c0_i32_0 = arith.constant 0 : i32
    %c0_i32_1 = arith.constant 0 : i32
    return %c0_i32, %c0_i32_0 : i32, i32
  }
  func.func @transform_1(%arg0: i32) -> (i32, i32) {
    %c0_i32 = arith.constant 0 : i32
    %c0_i32_0 = arith.constant 0 : i32
    %c0_i32_1 = arith.constant 0 : i32
    return %c0_i32, %c0_i32_0 : i32, i32
  }
  func.func @transform_2(%arg0: i32) -> (i32, i32) {
    %c0_i32 = arith.constant 0 : i32
    %c0_i32_0 = arith.constant 0 : i32
    %c0_i32_1 = arith.constant 0 : i32
    return %c0_i32, %c0_i32_0 : i32, i32
  }
  func.func @transform_3(%arg0: i32) -> (i32, i32) {
    %c0_i32 = arith.constant 0 : i32
    %c0_i32_0 = arith.constant 0 : i32
    %c0_i32_1 = arith.constant 0 : i32
    return %c0_i32, %c0_i32_0 : i32, i32
  }
  func.func @transform_4(%arg0: i32) -> (i32, i32) {
    %c0_i32 = arith.constant 0 : i32
    %c0_i32_0 = arith.constant 0 : i32
    %c0_i32_1 = arith.constant 0 : i32
    return %c0_i32, %c0_i32_0 : i32, i32
  }
  func.func @transform_5(%arg0: i32) -> (i32, i32) {
    %c0_i32 = arith.constant 0 : i32
    %c0_i32_0 = arith.constant 0 : i32
    %c0_i32_1 = arith.constant 0 : i32
    return %c0_i32, %c0_i32_0 : i32, i32
  }
}

</mosaic_0001>

<llo_original>
// kernel: tpu_custom_call.1
$region0: #{tpu_custom_call.1}
  #allocation0 [shape = 'u32[]', space=smem, size = 0x4, offset = 0x4, fixed_abs, tag = 'smem constant byte address 0x4 - core index']
  #allocation1 [shape = 'u32[144,128]{1,0:T(1,128)}', space=vmem, size = 0x12000, scoped, tag = 'internal scratch']
  %s0 = inlined_call_operand.hbm [shape: f32[32,64], index: 0, kind: input, shape index: {}]
  %s1 = inlined_call_operand.hbm [shape: f32[16,32], index: 1, kind: input, shape index: {}]
  %s2 = inlined_call_operand.hbm [shape: bf16[576,128], index: 2, kind: input, shape index: {}]
  %s3 = inlined_call_operand.hbm [shape: f32[24,128], index: 3, kind: input, shape index: {}]
  %s4 = inlined_call_operand.hbm [shape: f32[40,128], index: 4, kind: input, shape index: {}]
  %s5 = inlined_call_operand.hbm [shape: f32[2,128], index: 5, kind: output, shape index: {}]
  %s6 = sld [smem:[#allocation0]]
  $region50: #{tpu_custom_call.1} parent=0
    _
  %s8 = ssub.s32 1, %s6
  %s9 = scalar_select 0, %s8, %s6
  $region1: #{tpu_custom_call.1} parent=0
    #allocation2 [shape = 'u8[16384]{0}', space=vmem, size = 0x4000, scoped, tag = 'input window, operand 0, single buffered']
    #allocation3 [shape = 's32[1]{0}', space=sflag, size = 0x4, scoped, tag = 'scoped memory for tpu_custom_call.1']
    #allocation4 [shape = 's32[1]{0}', space=sflag, size = 0x4, scoped, tag = 'scoped memory for tpu_custom_call.1']
    #allocation5 [shape = 'u8[8192]{0}', space=vmem, size = 0x2000, scoped, tag = 'input window, operand 1, single buffered']
    #allocation6 [shape = 's32[1]{0}', space=sflag, size = 0x4, scoped, tag = 'scoped memory for tpu_custom_call.1']
    #allocation7 [shape = 'u8[147456]{0}', space=vmem, size = 0x24000, scoped, tag = 'input window, operand 2, single buffered']
    #allocation8 [shape = 'u8[12288]{0}', space=vmem, size = 0x3000, scoped, tag = 'input window, operand 3, single buffered']
    #allocation9 [shape = 's32[1]{0}', space=sflag, size = 0x4, scoped, tag = 'scoped memory for tpu_custom_call.1']
    #allocation10 [shape = 'u8[20480]{0}', space=vmem, size = 0x5000, scoped, tag = 'input window, operand 4, single buffered']
    #allocation11 [shape = 'u8[1024]{0}', space=vmem, size = 0x400, scoped, tag = 'output window, operand 0, single buffered']
    %10 = vsyncpa [#allocation3], 0
    %11 = vsyncpa [#allocation6], 0
    %12 = vsyncpa [#allocation9], 0
    %13 = vsyncpa [#allocation4], 0
    // Predicated region
    $region2: #{tpu_custom_call.1} parent=1 // pred_check
      _
    $region3: #{tpu_custom_call.1} parent=1 // pred_check_branch
      %15 = sbr.rel (0) target = $region5
    $region4: #{tpu_custom_call.1} parent=1 // pred_region
      %s17 = ssub.s32 512, 512
      %18 = vsyncadd [#allocation3], %s17
      %s19 = sshll.u32 [#allocation2], 4
      %s20 = int_to_ptr.vmem [resolvable:$true] %s19
      %25 = dma.hbm_to_vmem [thread:$0]  %s0, 512, %s20, [#allocation3], 128, 128, 8
    $region5: #{tpu_custom_call.1} parent=1 // pred_fallthru
      _
    // Predicated region
    $region6: #{tpu_custom_call.1} parent=1 // pred_check
      _
    $region7: #{tpu_custom_call.1} parent=1 // pred_check_branch
      %27 = sbr.rel (0) target = $region9
    $region8: #{tpu_custom_call.1} parent=1 // pred_region
      %s29 = ssub.s32 256, 256
      %30 = vsyncadd [#allocation6], %s29
      %s31 = sshll.u32 [#allocation5], 4
      %s32 = int_to_ptr.vmem [resolvable:$true] %s31
      %37 = dma.hbm_to_vmem [thread:$0]  %s1, 256, %s32, [#allocation6], 128, 128, 8
    $region9: #{tpu_custom_call.1} parent=1 // pred_fallthru
      _
    // Predicated region
    $region10: #{tpu_custom_call.1} parent=1 // pred_check
      _
    $region11: #{tpu_custom_call.1} parent=1 // pred_check_branch
      %39 = sbr.rel (0) target = $region13
    $region12: #{tpu_custom_call.1} parent=1 // pred_region
      %s41 = ssub.s32 4608, 4608
      %42 = vsyncadd [#allocation6], %s41
      %s43 = sshll.u32 [#allocation7], 4
      %s44 = int_to_ptr.vmem [resolvable:$true] %s43
      %49 = dma.hbm_to_vmem [thread:$0]  %s2, 4608, %s44, [#allocation6], 64, 64, 4
    $region13: #{tpu_custom_call.1} parent=1 // pred_fallthru
      _
    // Predicated region
    $region14: #{tpu_custom_call.1} parent=1 // pred_check
      _
    $region15: #{tpu_custom_call.1} parent=1 // pred_check_branch
      %51 = sbr.rel (0) target = $region17
    $region16: #{tpu_custom_call.1} parent=1 // pred_region
      %s53 = ssub.s32 384, 384
      %54 = vsyncadd [#allocation9], %s53
      %s55 = sshll.u32 [#allocation8], 4
      %s56 = int_to_ptr.vmem [resolvable:$true] %s55
      %61 = dma.hbm_to_vmem [thread:$0]  %s3, 384, %s56, [#allocation9], 128, 128, 8
    $region17: #{tpu_custom_call.1} parent=1 // pred_fallthru
      _
    // Predicated region
    $region18: #{tpu_custom_call.1} parent=1 // pred_check
      _
    $region19: #{tpu_custom_call.1} parent=1 // pred_check_branch
      %63 = sbr.rel (0) target = $region21
    $region20: #{tpu_custom_call.1} parent=1 // pred_region
      %s65 = ssub.s32 640, 640
      %66 = vsyncadd [#allocation9], %s65
      %s67 = sshll.u32 [#allocation10], 4
      %s68 = int_to_ptr.vmem [resolvable:$true] %s67
      %73 = dma.hbm_to_vmem [thread:$0]  %s4, 640, %s68, [#allocation9], 128, 128, 8
    $region21: #{tpu_custom_call.1} parent=1 // pred_fallthru
      _
    // Predicated region
    $region22: #{tpu_custom_call.1} parent=1 // pred_check
      _
    $region23: #{tpu_custom_call.1} parent=1 // pred_check_branch
      %75 = sbr.rel (0) target = $region25
    $region24: #{tpu_custom_call.1} parent=1 // pred_region
      %76 = dma.done [#allocation3], 512
    $region25: #{tpu_custom_call.1} parent=1 // pred_fallthru
      _
    // Predicated region
    $region26: #{tpu_custom_call.1} parent=1 // pred_check
      _
    $region27: #{tpu_custom_call.1} parent=1 // pred_check_branch
      %78 = sbr.rel (0) target = $region29
    $region28: #{tpu_custom_call.1} parent=1 // pred_region
      %79 = dma.done [#allocation6], 256
    $region29: #{tpu_custom_call.1} parent=1 // pred_fallthru
      _
    // Predicated region
    $region30: #{tpu_custom_call.1} parent=1 // pred_check
      _
    $region31: #{tpu_custom_call.1} parent=1 // pred_check_branch
      %81 = sbr.rel (0) target = $region33
    $region32: #{tpu_custom_call.1} parent=1 // pred_region
      %82 = dma.done [#allocation6], 4608
    $region33: #{tpu_custom_call.1} parent=1 // pred_fallthru
      _
    // Predicated region
    $region34: #{tpu_custom_call.1} parent=1 // pred_check
      _
    $region35: #{tpu_custom_call.1} parent=1 // pred_check_branch
      %84 = sbr.rel (0) target = $region37
    $region36: #{tpu_custom_call.1} parent=1 // pred_region
      %85 = dma.done [#allocation9], 384
    $region37: #{tpu_custom_call.1} parent=1 // pred_fallthru
      _
    // Predicated region
    $region38: #{tpu_custom_call.1} parent=1 // pred_check
      _
    $region39: #{tpu_custom_call.1} parent=1 // pred_check_branch
      %87 = sbr.rel (0) target = $region41
    $region40: #{tpu_custom_call.1} parent=1 // pred_region
      %88 = dma.done [#allocation9], 640
    $region41: #{tpu_custom_call.1} parent=1 // pred_fallthru
      _
    %v90 = vld [vmem:[#allocation2] sm:$0xff]
    %v91 = vld [vmem:[#allocation2 + $0x8] sm:$0xff]
    %v92 = vld [vmem:[#allocation2 + $0x10] sm:$0xff]
    %v93 = vld [vmem:[#allocation2 + $0x18] sm:$0xff]
    %v94 = vld [vmem:[#allocation5] sm:$0xff]
    %v95 = vld [vmem:[#allocation5 + $0x8] sm:$0xff]
    %v96 = vld [vmem:[#allocation10 + $0x10] sm:$0xff]
    %v97 = vld [vmem:[#allocation10 + $0x18] sm:$0xff]
    %v98 = vld [vmem:[#allocation10 + $0x20] sm:$0x3]
    %v99 = vld [vmem:[#allocation10] sm:$0xff]
    %v100 = vld [vmem:[#allocation10 + $0x8] sm:$0xff]
    %v101 = vld [vmem:[#allocation8] sm:$0x1]
    %v102 = vld [vmem:[#allocation8 + $0x1] sm:$0x1]
    %vm103 = vcmask 261120
    %v104 = vsel %vm103, %v99, 0.0
    %105 = vadd.xlane.f32.xlu0 %v104
    %v106 = vpop.xlane.xlu0 %105
    %v107 = vsel %vm103, %v100, 0.0
    %108 = vadd.xlane.f32.xlu0 %v107
    %v109 = vpop.xlane.xlu0 %108
    %v110 = vrcp.pop 32.0
    %v111 = vmul.f32 %v106, %v110
    %v112 = vmul.f32 %v109, %v110
    %v113 = vmul.f32 %v99, %v99
    %v114 = vmul.f32 %v100, %v100
    %v115 = vsel %vm103, %v113, 0.0
    %116 = vadd.xlane.f32.xlu0 %v115
    %v117 = vpop.xlane.xlu0 %116
    %v118 = vsel %vm103, %v114, 0.0
    %119 = vadd.xlane.f32.xlu0 %v118
    %v120 = vpop.xlane.xlu0 %119
    %v121 = vmul.f32 %v117, %v110
    %v122 = vmul.f32 %v120, %v110
    %v123 = vmul.f32 %v111, %v111
    %v124 = vmul.f32 %v112, %v112
    %v125 = vsub.f32 %v121, %v123
    %v126 = vsub.f32 %v122, %v124
    %v127 = vsub.f32 %v99, %v111
    %v128 = vsub.f32 %v100, %v112
    %v129 = vadd.f32 %v125, 1e-05
    %v130 = vadd.f32 %v126, 1e-05
    %v131 = vrsqrt.pop %v129
    %v132 = vrsqrt.pop %v130
    %v133 = vmul.f32 %v127, %v131
    %v134 = vmul.f32 %v128, %v132
    %v135 = vlaneseq
    %v136 = vshrl.u32 %v135, 7
    %v137 = vsub.s32 0, %v136
    %v138 = vrot.slane %v101, %v137
    %v139 = vmul.f32 %v133, %v138
    %v140 = vmul.f32 %v134, %v138
    %v141 = vlaneseq
    %v142 = vshrl.u32 %v141, 7
    %v143 = vsub.s32 0, %v142
    %v144 = vrot.slane %v102, %v143
    %v145 = vadd.f32 %v139, %v144
    %v146 = vadd.f32 %v140, %v144
    %v147 = vld [vmem:[#allocation8 + $0x2] sm:$0x1]
    %v148 = vld [vmem:[#allocation8 + $0x3] sm:$0x1]
    %vm149 = vcmask 523264
    %v150 = vsel %vm149, %v90, 0.0
    %151 = vadd.xlane.f32.xlu0 %v150
    %v152 = vpop.xlane.xlu0 %151
    %v153 = vsel %vm149, %v91, 0.0
    %154 = vadd.xlane.f32.xlu0 %v153
    %v155 = vpop.xlane.xlu0 %154
    %v156 = vsel %vm149, %v92, 0.0
    %157 = vadd.xlane.f32.xlu0 %v156
    %v158 = vpop.xlane.xlu0 %157
    %v159 = vsel %vm149, %v93, 0.0
    %160 = vadd.xlane.f32.xlu0 %v159
    %v161 = vpop.xlane.xlu0 %160
    %v162 = vrcp.pop 64.0
    %v163 = vmul.f32 %v152, %v162
    %v164 = vmul.f32 %v155, %v162
    %v165 = vmul.f32 %v158, %v162
    %v166 = vmul.f32 %v161, %v162
    %v167 = vmul.f32 %v90, %v90
    %v168 = vmul.f32 %v91, %v91
    %v169 = vmul.f32 %v92, %v92
    %v170 = vmul.f32 %v93, %v93
    %v171 = vsel %vm149, %v167, 0.0
    %172 = vadd.xlane.f32.xlu0 %v171
    %v173 = vpop.xlane.xlu0 %172
    %v174 = vsel %vm149, %v168, 0.0
    %175 = vadd.xlane.f32.xlu0 %v174
    %v176 = vpop.xlane.xlu0 %175
    %v177 = vsel %vm149, %v169, 0.0
    %178 = vadd.xlane.f32.xlu0 %v177
    %v179 = vpop.xlane.xlu0 %178
    %v180 = vsel %vm149, %v170, 0.0
    %181 = vadd.xlane.f32.xlu0 %v180
    %v182 = vpop.xlane.xlu0 %181
    %v183 = vmul.f32 %v173, %v162
    %v184 = vmul.f32 %v176, %v162
    %v185 = vmul.f32 %v179, %v162
    %v186 = vmul.f32 %v182, %v162
    %v187 = vmul.f32 %v163, %v163
    %v188 = vmul.f32 %v164, %v164
    %v189 = vmul.f32 %v165, %v165
    %v190 = vmul.f32 %v166, %v166
    %v191 = vsub.f32 %v183, %v187
    %v192 = vsub.f32 %v184, %v188
    %v193 = vsub.f32 %v185, %v189
    %v194 = vsub.f32 %v186, %v190
    %v195 = vsub.f32 %v90, %v163
    %v196 = vsub.f32 %v91, %v164
    %v197 = vsub.f32 %v92, %v165
    %v198 = vsub.f32 %v93, %v166
    %v199 = vadd.f32 %v191, 1e-05
    %v200 = vadd.f32 %v192, 1e-05
    %v201 = vadd.f32 %v193, 1e-05
    %v202 = vadd.f32 %v194, 1e-05
    %v203 = vrsqrt.pop %v199
    %v204 = vrsqrt.pop %v200
    %v205 = vrsqrt.pop %v201
    %v206 = vrsqrt.pop %v202
    %v207 = vmul.f32 %v195, %v203
    %v208 = vmul.f32 %v196, %v204
    %v209 = vmul.f32 %v197, %v205
    %v210 = vmul.f32 %v198, %v206
    %v211 = vlaneseq
    %v212 = vshrl.u32 %v211, 7
    %v213 = vsub.s32 0, %v212
    %v214 = vrot.slane %v147, %v213
    %v215 = vmul.f32 %v207, %v214
    %v216 = vmul.f32 %v208, %v214
    %v217 = vmul.f32 %v209, %v214
    %v218 = vmul.f32 %v210, %v214
    %v219 = vlaneseq
    %v220 = vshrl.u32 %v219, 7
    %v221 = vsub.s32 0, %v220
    %v222 = vrot.slane %v148, %v221
    %v223 = vadd.f32 %v215, %v222
    %v224 = vadd.f32 %v216, %v222
    %v225 = vadd.f32 %v217, %v222
    %v226 = vadd.f32 %v218, %v222
    %v227 = vld [vmem:[#allocation7] sm:$0xf]
    %v228 = vld [vmem:[#allocation7 + $0x4] sm:$0xf]
    %v229 = vld [vmem:[#allocation7 + $0x8] sm:$0xf]
    %v230 = vld [vmem:[#allocation7 + $0xc] sm:$0xf]
    %v231 = vpack.c.bf16 %v146, %v145
    %v236 = vunpack.c.l.b16 %v227
    %v237 = vunpack.c.l.b16 %v228
    %v238 = vunpack.c.l.b16 %v229
    %v239 = vunpack.c.l.b16 %v230
    %v240 = vpack.c.b16 %v237, %v236
    %v241 = vpack.c.b16 %v239, %v238
    %v245 = vsel %vm103, %v231, 0
    %247 = vmatprep.subr.bf16.mxu0 0
    %248 = vmatpush1.bf16.msra.mxu0 %v240
    %249 = vmatprep.subr.bf16.mxu0 0
    %250 = vmatpush1.bf16.msra.mxu0 %v241
    %251 = vmatprep.subr.bf16.mxu0 0
    %252 = vmatpush1.bf16.msra.mxu0 0
    %253 = vmatprep.subr.bf16.mxu0 0
    %254 = vmatpush1.bf16.msra.mxu0 0
    %255 = vmatprep.subr.bf16.mxu0 0
    %256 = vmatpush1.bf16.msra.mxu0 0
    %257 = vmatprep.subr.bf16.mxu0 0
    %258 = vmatpush1.bf16.msra.mxu0 0
    %259 = vmatprep.subr.bf16.mxu0 0
    %260 = vmatpush1.bf16.msra.mxu0 0
    %261 = vmatprep.subr.bf16.mxu0 0
    %262 = vmatpush1.bf16.msra.mxu0 0
    %263 = vmatprep.subr.bf16.mxu0 0
    %264 = vmatpush1.bf16.msra.mxu0 0
    %265 = vmatprep.subr.bf16.mxu0 0
    %266 = vmatpush1.bf16.msra.mxu0 0
    %267 = vmatprep.subr.bf16.mxu0 0
    %268 = vmatpush1.bf16.msra.mxu0 0
    %269 = vmatprep.subr.bf16.mxu0 0
    %270 = vmatpush1.bf16.msra.mxu0 0
    %271 = vmatprep.subr.bf16.mxu0 0
    %272 = vmatpush1.bf16.msra.mxu0 0
    %273 = vmatprep.subr.bf16.mxu0 0
    %274 = vmatpush1.bf16.msra.mxu0 0
    %275 = vmatprep.subr.bf16.mxu0 0
    %276 = vmatpush1.bf16.msra.mxu0 0
    %277 = vmatprep.subr.bf16.mxu0 0
    %278 = vmatpush1.bf16.msra.mxu0 0
    %279 = vmatprep.mubr.bf16.mxu0 0
    %280 = vmatmul.mubr.bf16.gmra.mrb[0].mxu0 %v245
    %v281 = vpop.f32.mrb[0].mxu0
    %v282 = vadd.f32 0.0, %v281
    %v283 = vpop.f32.mrb[0].mxu0
    %v284 = vpop.f32.mrb[0].mxu0
    %v285 = vadd.f32 0.0, %v284
    %v286 = vpop.f32.mrb[0].mxu0
    %287 = vdwg.mxu0
    %v288 = vld [vmem:[#allocation7 + $0x10] sm:$0xf]
    %v289 = vld [vmem:[#allocation7 + $0x14] sm:$0xf]
    %v290 = vld [vmem:[#allocation7 + $0x18] sm:$0xf]
    %v291 = vld [vmem:[#allocation7 + $0x1c] sm:$0xf]
    %v292 = vld [vmem:[#allocation7 + $0x20] sm:$0xf]
    %v293 = vld [vmem:[#allocation7 + $0x24] sm:$0xf]
    %v294 = vld [vmem:[#allocation7 + $0x28] sm:$0xf]
    %v295 = vld [vmem:[#allocation7 + $0x2c] sm:$0xf]
    %v296 = vpack.c.bf16 %v224, %v223
    %v297 = vpack.c.bf16 %v226, %v225
    %v306 = vunpack.c.l.b16 %v288
    %v307 = vunpack.c.l.b16 %v289
    %v308 = vunpack.c.l.b16 %v290
    %v309 = vunpack.c.l.b16 %v291
    %v310 = vunpack.c.l.b16 %v292
    %v311 = vunpack.c.l.b16 %v293
    %v312 = vunpack.c.l.b16 %v294
    %v313 = vunpack.c.l.b16 %v295
    %v314 = vpack.c.b16 %v307, %v306
    %v315 = vpack.c.b16 %v309, %v308
    %v316 = vpack.c.b16 %v311, %v310
    %v317 = vpack.c.b16 %v313, %v312
    %v323 = vsel %vm149, %v296, 0
    %v326 = vsel %vm149, %v297, 0
    %328 = vmatprep.subr.bf16.mxu0 0
    %329 = vmatpush1.bf16.msra.mxu0 %v314
    %330 = vmatprep.subr.bf16.mxu0 0
    %331 = vmatpush1.bf16.msra.mxu0 %v315
    %332 = vmatprep.subr.bf16.mxu0 0
    %333 = vmatpush1.bf16.msra.mxu0 %v316
    %334 = vmatprep.subr.bf16.mxu0 0
    %335 = vmatpush1.bf16.msra.mxu0 %v317
    %336 = vmatprep.subr.bf16.mxu0 0
    %337 = vmatpush1.bf16.msra.mxu0 0
    %338 = vmatprep.subr.bf16.mxu0 0
    %339 = vmatpush1.bf16.msra.mxu0 0
    %340 = vmatprep.subr.bf16.mxu0 0
    %341 = vmatpush1.bf16.msra.mxu0 0
    %342 = vmatprep.subr.bf16.mxu0 0
    %343 = vmatpush1.bf16.msra.mxu0 0
    %344 = vmatprep.subr.bf16.mxu0 0
    %345 = vmatpush1.bf16.msra.mxu0 0
    %346 = vmatprep.subr.bf16.mxu0 0
    %347 = vmatpush1.bf16.msra.mxu0 0
    %348 = vmatprep.subr.bf16.mxu0 0
    %349 = vmatpush1.bf16.msra.mxu0 0
    %350 = vmatprep.subr.bf16.mxu0 0
    %351 = vmatpush1.bf16.msra.mxu0 0
    %352 = vmatprep.subr.bf16.mxu0 0
    %353 = vmatpush1.bf16.msra.mxu0 0
    %354 = vmatprep.subr.bf16.mxu0 0
    %355 = vmatpush1.bf16.msra.mxu0 0
    %356 = vmatprep.subr.bf16.mxu0 0
    %357 = vmatpush1.bf16.msra.mxu0 0
    %358 = vmatprep.subr.bf16.mxu0 0
    %359 = vmatpush1.bf16.msra.mxu0 0
    %360 = vmatprep.mubr.bf16.mxu0 0
    %361 = vmatmul.mubr.bf16.gmra.mrb[0].mxu0 %v323
    %v362 = vpop.f32.mrb[0].mxu0
    %v363 = vadd.f32 0.0, %v362
    %v364 = vpop.f32.mrb[0].mxu0
    %v365 = vpop.f32.mrb[0].mxu0
    %v366 = vadd.f32 0.0, %v365
    %v367 = vpop.f32.mrb[0].mxu0
    %368 = vmatprep.mubr.bf16.mxu0 0
    %369 = vmatmul.mubr.bf16.gmra.mrb[0].mxu0 %v326
    %v370 = vpop.f32.mrb[0].mxu0
    %v371 = vadd.f32 0.0, %v370
    %v372 = vpop.f32.mrb[0].mxu0
    %v373 = vpop.f32.mrb[0].mxu0
    %v374 = vadd.f32 0.0, %v373
    %v375 = vpop.f32.mrb[0].mxu0
    %376 = vdwg.mxu0
    %v378 = vsel %vm103, %v282, 0
    %v381 = vsel %vm103, %v285, 0
    %v384 = vsel %vm103, %v363, 0
    %v387 = vsel %vm103, %v366, 0
    %v390 = vsel %vm103, %v371, 0
    %v393 = vsel %vm103, %v374, 0
    %395 = vmatprep.subr.mxu0 0.0
    %396 = vmatpush1.xpose.msra.mxu0 %v384
    %397 = vmatprep.subr.mxu0 0.0
    %398 = vmatpush1.xpose.msra.mxu0 %v387
    %399 = vmatprep.subr.mxu0 0.0
    %400 = vmatpush1.xpose.msra.mxu0 %v390
    %401 = vmatprep.subr.mxu0 0.0
    %402 = vmatpush1.xpose.msra.mxu0 %v393
    %403 = vmatprep.subr.mxu0 0.0
    %404 = vmatpush1.xpose.msra.mxu0 0.0
    %405 = vmatprep.subr.mxu0 0.0
    %406 = vmatpush1.xpose.msra.mxu0 0.0
    %407 = vmatprep.subr.mxu0 0.0
    %408 = vmatpush1.xpose.msra.mxu0 0.0
    %409 = vmatprep.subr.mxu0 0.0
    %410 = vmatpush1.xpose.msra.mxu0 0.0
    %411 = vmatprep.subr.mxu0 0.0
    %412 = vmatpush1.xpose.msra.mxu0 0.0
    %413 = vmatprep.subr.mxu0 0.0
    %414 = vmatpush1.xpose.msra.mxu0 0.0
    %415 = vmatprep.subr.mxu0 0.0
    %416 = vmatpush1.xpose.msra.mxu0 0.0
    %417 = vmatprep.subr.mxu0 0.0
    %418 = vmatpush1.xpose.msra.mxu0 0.0
    %419 = vmatprep.subr.mxu0 0.0
    %420 = vmatpush1.xpose.msra.mxu0 0.0
    %421 = vmatprep.subr.mxu0 0.0
    %422 = vmatpush1.xpose.msra.mxu0 0.0
    %423 = vmatprep.subr.mxu0 0.0
    %424 = vmatpush1.xpose.msra.mxu0 0.0
    %425 = vmatprep.subr.mxu0 0.0
    %426 = vmatpush1.xpose.msra.mxu0 0.0
    %427 = vmatprep.subr.mxu0 0.0
    %428 = vmatpush1.xpose.msra.mxu0 0.0
    %429 = vmatprep.subr.mxu0 0.0
    %430 = vmatpush1.xpose.msra.mxu0 0.0
    %431 = vmatprep.subr.mxu0 0.0
    %432 = vmatpush1.xpose.msra.mxu0 0.0
    %433 = vmatprep.subr.mxu0 0.0
    %434 = vmatpush1.xpose.msra.mxu0 0.0
    %435 = vmatprep.subr.mxu0 0.0
    %436 = vmatpush1.xpose.msra.mxu0 0.0
    %437 = vmatprep.subr.mxu0 0.0
    %438 = vmatpush1.xpose.msra.mxu0 0.0
    %439 = vmatprep.subr.mxu0 0.0
    %440 = vmatpush1.xpose.msra.mxu0 0.0
    %441 = vmatprep.subr.mxu0 0.0
    %442 = vmatpush1.xpose.msra.mxu0 0.0
    %443 = vmatprep.subr.mxu0 0.0
    %444 = vmatpush1.xpose.msra.mxu0 0.0
    %445 = vmatprep.subr.mxu0 0.0
    %446 = vmatpush1.xpose.msra.mxu0 0.0
    %447 = vmatprep.subr.mxu0 0.0
    %448 = vmatpush1.xpose.msra.mxu0 0.0
    %449 = vmatprep.subr.mxu0 0.0
    %450 = vmatpush1.xpose.msra.mxu0 0.0
    %451 = vmatprep.subr.mxu0 0.0
    %452 = vmatpush1.xpose.msra.mxu0 0.0
    %453 = vmatprep.subr.mxu0 0.0
    %454 = vmatpush1.xpose.msra.mxu0 0.0
    %455 = vmatprep.subr.mxu0 0.0
    %456 = vmatpush1.xpose.msra.mxu0 0.0
    %457 = vmatprep.subr.mxu0 0.0
    %458 = vmatpush1.xpose.msra.mxu0 0.0
    %459 = vmatprep.mubr.f32.mxu0 0.0
    %460 = vmatmul.mubr.f32.gmra.mrb[0].mxu0 %v378
    %v461 = vpop.f32.mrb[0].mxu0
    %v462 = vadd.f32 0.0, %v461
    %v463 = vpop.f32.mrb[0].mxu0
    %464 = vmatprep.mubr.f32.mxu0 0.0
    %465 = vmatmul.mubr.f32.gmra.mrb[0].mxu0 %v381
    %v466 = vpop.f32.mrb[0].mxu0
    %v467 = vadd.f32 0.0, %v466
    %v468 = vpop.f32.mrb[0].mxu0
    %469 = vdwg.mxu0
    %v470 = vmul.f32 %v462, 0.17677669
    %v471 = vmul.f32 %v467, 0.17677669
    %v472 = vadd.f32 %v470, %v94
    %v473 = vadd.f32 %v471, %v95
    %v474 = vsel %vm103, %v472, -inf
    %475 = vmax.xlane.f32.xlu0 %v474
    %v476 = vpop.xlane.xlu0 %475
    %v477 = vsel %vm103, %v473, -inf
    %478 = vmax.xlane.f32.xlu0 %v477
    %v479 = vpop.xlane.xlu0 %478
    %v480 = vsub.f32 %v472, %v476
    %v481 = vsub.f32 %v473, %v479
    %v482 = vmul.f32 %v480, 1.442695
    %v483 = vpow.pop %v482
    %v484 = vmul.f32 %v481, 1.442695
    %v485 = vpow.pop %v484
    %v486 = vsel %vm103, %v483, 0.0
    %487 = vadd.xlane.f32.xlu0 %v486
    %v488 = vpop.xlane.xlu0 %487
    %v489 = vsel %vm103, %v485, 0.0
    %490 = vadd.xlane.f32.xlu0 %v489
    %v491 = vpop.xlane.xlu0 %490
    %v492 = vrcp.pop %v488
    %v493 = vmul.f32 %v483, %v492
    %v494 = vrcp.pop %v491
    %v495 = vmul.f32 %v485, %v494
    %496 = vrot.lane.b32.xlu0 %v363, 96
    %v497 = vpop.permute.xlu0 %496
    %498 = vrot.lane.b32.xlu0 %v366, 96
    %v499 = vpop.permute.xlu0 %498
    %500 = vrot.lane.b32.xlu0 %v371, 96
    %v501 = vpop.permute.xlu0 %500
    %502 = vrot.lane.b32.xlu0 %v374, 96
    %v503 = vpop.permute.xlu0 %502
    %v509 = vsel %vm103, %v493, 0
    %v512 = vsel %vm103, %v495, 0
    %514 = vmatprep.subr.mxu0 0.0
    %515 = vmatpush1.msra.mxu0 %v497
    %516 = vmatprep.subr.mxu0 0.0
    %517 = vmatpush1.msra.mxu0 %v499
    %518 = vmatprep.subr.mxu0 0.0
    %519 = vmatpush1.msra.mxu0 %v501
    %520 = vmatprep.subr.mxu0 0.0
    %521 = vmatpush1.msra.mxu0 %v503
    %522 = vmatprep.subr.mxu0 0.0
    %523 = vmatpush1.msra.mxu0 0.0
    %524 = vmatprep.subr.mxu0 0.0
    %525 = vmatpush1.msra.mxu0 0.0
    %526 = vmatprep.subr.mxu0 0.0
    %527 = vmatpush1.msra.mxu0 0.0
    %528 = vmatprep.subr.mxu0 0.0
    %529 = vmatpush1.msra.mxu0 0.0
    %530 = vmatprep.subr.mxu0 0.0
    %531 = vmatpush1.msra.mxu0 0.0
    %532 = vmatprep.subr.mxu0 0.0
    %533 = vmatpush1.msra.mxu0 0.0
    %534 = vmatprep.subr.mxu0 0.0
    %535 = vmatpush1.msra.mxu0 0.0
    %536 = vmatprep.subr.mxu0 0.0
    %537 = vmatpush1.msra.mxu0 0.0
    %538 = vmatprep.subr.mxu0 0.0
    %539 = vmatpush1.msra.mxu0 0.0
    %540 = vmatprep.subr.mxu0 0.0
    %541 = vmatpush1.msra.mxu0 0.0
    %542 = vmatprep.subr.mxu0 0.0
    %543 = vmatpush1.msra.mxu0 0.0
    %544 = vmatprep.subr.mxu0 0.0
    %545 = vmatpush1.msra.mxu0 0.0
    %546 = vmatprep.subr.mxu0 0.0
    %547 = vmatpush1.msra.mxu0 0.0
    %548 = vmatprep.subr.mxu0 0.0
    %549 = vmatpush1.msra.mxu0 0.0
    %550 = vmatprep.subr.mxu0 0.0
    %551 = vmatpush1.msra.mxu0 0.0
    %552 = vmatprep.subr.mxu0 0.0
    %553 = vmatpush1.msra.mxu0 0.0
    %554 = vmatprep.subr.mxu0 0.0
    %555 = vmatpush1.msra.mxu0 0.0
    %556 = vmatprep.subr.mxu0 0.0
    %557 = vmatpush1.msra.mxu0 0.0
    %558 = vmatprep.subr.mxu0 0.0
    %559 = vmatpush1.msra.mxu0 0.0
    %560 = vmatprep.subr.mxu0 0.0
    %561 = vmatpush1.msra.mxu0 0.0
    %562 = vmatprep.subr.mxu0 0.0
    %563 = vmatpush1.msra.mxu0 0.0
    %564 = vmatprep.subr.mxu0 0.0
    %565 = vmatpush1.msra.mxu0 0.0
    %566 = vmatprep.subr.mxu0 0.0
    %567 = vmatpush1.msra.mxu0 0.0
    %568 = vmatprep.subr.mxu0 0.0
    %569 = vmatpush1.msra.mxu0 0.0
    %570 = vmatprep.subr.mxu0 0.0
    %571 = vmatpush1.msra.mxu0 0.0
    %572 = vmatprep.subr.mxu0 0.0
    %573 = vmatpush1.msra.mxu0 0.0
    %574 = vmatprep.subr.mxu0 0.0
    %575 = vmatpush1.msra.mxu0 0.0
    %576 = vmatprep.subr.mxu0 0.0
    %577 = vmatpush1.msra.mxu0 0.0
    %578 = vmatprep.mubr.f32.mxu0 0.0
    %579 = vmatmul.mubr.f32.gmra.mrb[0].mxu0 %v509
    %v580 = vpop.f32.mrb[0].mxu0
    %v581 = vadd.f32 0.0, %v580
    %v582 = vpop.f32.mrb[0].mxu0
    %583 = vmatprep.mubr.f32.mxu0 0.0
    %584 = vmatmul.mubr.f32.gmra.mrb[0].mxu0 %v512
    %v585 = vpop.f32.mrb[0].mxu0
    %v586 = vadd.f32 0.0, %v585
    %v587 = vpop.f32.mrb[0].mxu0
    %588 = vdwg.mxu0
    %v589 = vld [vmem:[#allocation7 + $0x30] sm:$0xf]
    %v590 = vld [vmem:[#allocation7 + $0x34] sm:$0xf]
    %v591 = vld [vmem:[#allocation7 + $0x38] sm:$0xf]
    %v592 = vld [vmem:[#allocation7 + $0x3c] sm:$0xf]
    %v593 = vpack.c.bf16 %v586, %v581
    %v598 = vunpack.c.l.b16 %v589
    %v599 = vunpack.c.l.b16 %v590
    %v600 = vunpack.c.l.b16 %v591
    %v601 = vunpack.c.l.b16 %v592
    %v602 = vpack.c.b16 %v599, %v598
    %v603 = vpack.c.b16 %v601, %v600
    %v607 = vsel %vm103, %v593, 0
    %609 = vmatprep.subr.bf16.mxu0 0
    %610 = vmatpush1.bf16.msra.mxu0 %v602
    %611 = vmatprep.subr.bf16.mxu0 0
    %612 = vmatpush1.bf16.msra.mxu0 %v603
    %613 = vmatprep.subr.bf16.mxu0 0
    %614 = vmatpush1.bf16.msra.mxu0 0
    %615 = vmatprep.subr.bf16.mxu0 0
    %616 = vmatpush1.bf16.msra.mxu0 0
    %617 = vmatprep.subr.bf16.mxu0 0
    %618 = vmatpush1.bf16.msra.mxu0 0
    %619 = vmatprep.subr.bf16.mxu0 0
    %620 = vmatpush1.bf16.msra.mxu0 0
    %621 = vmatprep.subr.bf16.mxu0 0
    %622 = vmatpush1.bf16.msra.mxu0 0
    %623 = vmatprep.subr.bf16.mxu0 0
    %624 = vmatpush1.bf16.msra.mxu0 0
    %625 = vmatprep.subr.bf16.mxu0 0
    %626 = vmatpush1.bf16.msra.mxu0 0
    %627 = vmatprep.subr.bf16.mxu0 0
    %628 = vmatpush1.bf16.msra.mxu0 0
    %629 = vmatprep.subr.bf16.mxu0 0
    %630 = vmatpush1.bf16.msra.mxu0 0
    %631 = vmatprep.subr.bf16.mxu0 0
    %632 = vmatpush1.bf16.msra.mxu0 0
    %633 = vmatprep.subr.bf16.mxu0 0
    %634 = vmatpush1.bf16.msra.mxu0 0
    %635 = vmatprep.subr.bf16.mxu0 0
    %636 = vmatpush1.bf16.msra.mxu0 0
    %637 = vmatprep.subr.bf16.mxu0 0
    %638 = vmatpush1.bf16.msra.mxu0 0
    %639 = vmatprep.subr.bf16.mxu0 0
    %640 = vmatpush1.bf16.msra.mxu0 0
    %641 = vmatprep.mubr.bf16.mxu0 0
    %642 = vmatmul.mubr.bf16.gmra.mrb[0].mxu0 %v607
    %v643 = vpop.f32.mrb[0].mxu0
    %v644 = vadd.f32 0.0, %v643
    %v645 = vpop.f32.mrb[0].mxu0
    %v646 = vpop.f32.mrb[0].mxu0
    %v647 = vadd.f32 0.0, %v646
    %v648 = vpop.f32.mrb[0].mxu0
    %649 = vdwg.mxu0
    %v650 = vadd.f32 %v99, %v644
    %v651 = vadd.f32 %v100, %v647
    %v652 = vld [vmem:[#allocation8 + $0x4] sm:$0x1]
    %v653 = vld [vmem:[#allocation8 + $0x5] sm:$0x1]
    %v654 = vsel %vm103, %v650, 0.0
    %655 = vadd.xlane.f32.xlu0 %v654
    %v656 = vpop.xlane.xlu0 %655
    %v657 = vsel %vm103, %v651, 0.0
    %658 = vadd.xlane.f32.xlu0 %v657
    %v659 = vpop.xlane.xlu0 %658
    %v660 = vmul.f32 %v656, %v110
    %v661 = vmul.f32 %v659, %v110
    %v662 = vmul.f32 %v650, %v650
    %v663 = vmul.f32 %v651, %v651
    %v664 = vsel %vm103, %v662, 0.0
    %665 = vadd.xlane.f32.xlu0 %v664
    %v666 = vpop.xlane.xlu0 %665
    %v667 = vsel %vm103, %v663, 0.0
    %668 = vadd.xlane.f32.xlu0 %v667
    %v669 = vpop.xlane.xlu0 %668
    %v670 = vmul.f32 %v666, %v110
    %v671 = vmul.f32 %v669, %v110
    %v672 = vmul.f32 %v660, %v660
    %v673 = vmul.f32 %v661, %v661
    %v674 = vsub.f32 %v670, %v672
    %v675 = vsub.f32 %v671, %v673
    %v676 = vsub.f32 %v650, %v660
    %v677 = vsub.f32 %v651, %v661
    %v678 = vadd.f32 %v674, 1e-05
    %v679 = vadd.f32 %v675, 1e-05
    %v680 = vrsqrt.pop %v678
    %v681 = vrsqrt.pop %v679
    %v682 = vmul.f32 %v676, %v680
    %v683 = vmul.f32 %v677, %v681
    %v684 = vlaneseq
    %v685 = vshrl.u32 %v684, 7
    %v686 = vsub.s32 0, %v685
    %v687 = vrot.slane %v652, %v686
    %v688 = vmul.f32 %v682, %v687
    %v689 = vmul.f32 %v683, %v687
    %v690 = vlaneseq
    %v691 = vshrl.u32 %v690, 7
    %v692 = vsub.s32 0, %v691
    %v693 = vrot.slane %v653, %v692
    %v694 = vadd.f32 %v688, %v693
    %v695 = vadd.f32 %v689, %v693
    %v696 = vld [vmem:[#allocation7 + $0x40] sm:$0xf]
    %v697 = vld [vmem:[#allocation7 + $0x44] sm:$0xf]
    %v698 = vld [vmem:[#allocation7 + $0x48] sm:$0xf]
    %v699 = vld [vmem:[#allocation7 + $0x4c] sm:$0xf]
    %v700 = vpack.c.bf16 %v695, %v694
    %v701 = vld [vmem:[#allocation8 + $0x6] sm:$0x1]
    %v702 = vlaneseq
    %v703 = vshrl.u32 %v702, 7
    %v704 = vsub.s32 0, %v703
    %v705 = vrot.slane %v701, %v704
    %v710 = vunpack.c.l.b16 %v696
    %v711 = vunpack.c.l.b16 %v697
    %v712 = vunpack.c.l.b16 %v698
    %v713 = vunpack.c.l.b16 %v699
    %v714 = vpack.c.b16 %v711, %v710
    %v715 = vpack.c.b16 %v713, %v712
    %v719 = vsel %vm103, %v700, 0
    %721 = vmatprep.subr.bf16.mxu0 0
    %722 = vmatpush1.bf16.msra.mxu0 %v714
    %723 = vmatprep.subr.bf16.mxu0 0
    %724 = vmatpush1.bf16.msra.mxu0 %v715
    %725 = vmatprep.subr.bf16.mxu0 0
    %726 = vmatpush1.bf16.msra.mxu0 0
    %727 = vmatprep.subr.bf16.mxu0 0
    %728 = vmatpush1.bf16.msra.mxu0 0
    %729 = vmatprep.subr.bf16.mxu0 0
    %730 = vmatpush1.bf16.msra.mxu0 0
    %731 = vmatprep.subr.bf16.mxu0 0
    %732 = vmatpush1.bf16.msra.mxu0 0
    %733 = vmatprep.subr.bf16.mxu0 0
    %734 = vmatpush1.bf16.msra.mxu0 0
    %735 = vmatprep.subr.bf16.mxu0 0
    %736 = vmatpush1.bf16.msra.mxu0 0
    %737 = vmatprep.subr.bf16.mxu0 0
    %738 = vmatpush1.bf16.msra.mxu0 0
    %739 = vmatprep.subr.bf16.mxu0 0
    %740 = vmatpush1.bf16.msra.mxu0 0
    %741 = vmatprep.subr.bf16.mxu0 0
    %742 = vmatpush1.bf16.msra.mxu0 0
    %743 = vmatprep.subr.bf16.mxu0 0
    %744 = vmatpush1.bf16.msra.mxu0 0
    %745 = vmatprep.subr.bf16.mxu0 0
    %746 = vmatpush1.bf16.msra.mxu0 0
    %747 = vmatprep.subr.bf16.mxu0 0
    %748 = vmatpush1.bf16.msra.mxu0 0
    %749 = vmatprep.subr.bf16.mxu0 0
    %750 = vmatpush1.bf16.msra.mxu0 0
    %751 = vmatprep.subr.bf16.mxu0 0
    %752 = vmatpush1.bf16.msra.mxu0 0
    %753 = vmatprep.mubr.bf16.mxu0 0
    %754 = vmatmul.mubr.bf16.gmra.mrb[0].mxu0 %v719
    %v755 = vpop.f32.mrb[0].mxu0
    %v756 = vadd.f32 %v705, %v755
    %v757 = vpop.f32.mrb[0].mxu0
    %v758 = vpop.f32.mrb[0].mxu0
    %v759 = vadd.f32 %v705, %v758
    %v760 = vpop.f32.mrb[0].mxu0
    %761 = vdwg.mxu0
    %v762 = vmul.f32 %v756, 0.5
    %v763 = vmul.f32 %v759, 0.5
    %v764 = vmul.f32 %v756, 0.044715
    %v765 = vmul.f32 %v759, 0.044715
    %v766 = vmul.f32 %v764, %v756
    %v767 = vmul.f32 %v765, %v759
    %v768 = vmul.f32 %v766, %v756
    %v769 = vmul.f32 %v767, %v759
    %v770 = vadd.f32 %v756, %v768
    %v771 = vadd.f32 %v759, %v769
    %v772 = vmul.f32 %v770, 0.7978846
    %v773 = vmul.f32 %v771, 0.7978846
    %v774 = vtanh.pop %v772
    %v775 = vtanh.pop %v773
    %v776 = vadd.f32 %v774, 1.0
    %v777 = vadd.f32 %v775, 1.0
    %v778 = vmul.f32 %v762, %v776
    %v779 = vmul.f32 %v763, %v777
    %v780 = vld [vmem:[#allocation7 + $0x50] sm:$0xf]
    %v781 = vld [vmem:[#allocation7 + $0x54] sm:$0xf]
    %v782 = vld [vmem:[#allocation7 + $0x58] sm:$0xf]
    %v783 = vld [vmem:[#allocation7 + $0x5c] sm:$0xf]
    %v784 = vld [vmem:[#allocation7 + $0x60] sm:$0xf]
    %v785 = vld [vmem:[#allocation7 + $0x64] sm:$0xf]
    %v786 = vld [vmem:[#allocation7 + $0x68] sm:$0xf]
    %v787 = vld [vmem:[#allocation7 + $0x6c] sm:$0xf]
    %v788 = vld [vmem:[#allocation7 + $0x70] sm:$0xf]
    %v789 = vld [vmem:[#allocation7 + $0x74] sm:$0xf]
    %v790 = vld [vmem:[#allocation7 + $0x78] sm:$0xf]
    %v791 = vld [vmem:[#allocation7 + $0x7c] sm:$0xf]
    %v792 = vld [vmem:[#allocation7 + $0x80] sm:$0xf]
    %v793 = vld [vmem:[#allocation7 + $0x84] sm:$0xf]
    %v794 = vld [vmem:[#allocation7 + $0x88] sm:$0xf]
    %v795 = vld [vmem:[#allocation7 + $0x8c] sm:$0xf]
    %v796 = vpack.c.bf16 %v779, %v778
    %v813 = vunpack.c.l.b16 %v780
    %v814 = vunpack.c.l.b16 %v781
    %v815 = vunpack.c.l.b16 %v782
    %v816 = vunpack.c.l.b16 %v783
    %v817 = vunpack.c.l.b16 %v784
    %v818 = vunpack.c.l.b16 %v785
    %v819 = vunpack.c.l.b16 %v786
    %v820 = vunpack.c.l.b16 %v787
    %v821 = vunpack.c.l.b16 %v788
    %v822 = vunpack.c.l.b16 %v789
    %v823 = vunpack.c.l.b16 %v790
    %v824 = vunpack.c.l.b16 %v791
    %v825 = vunpack.c.l.b16 %v792
    %v826 = vunpack.c.l.b16 %v793
    %v827 = vunpack.c.l.b16 %v794
    %v828 = vunpack.c.l.b16 %v795
    %v829 = vpack.c.b16 %v814, %v813
    %v830 = vpack.c.b16 %v816, %v815
    %v831 = vpack.c.b16 %v818, %v817
    %v832 = vpack.c.b16 %v820, %v819
    %v833 = vpack.c.b16 %v822, %v821
    %v834 = vpack.c.b16 %v824, %v823
    %v835 = vpack.c.b16 %v826, %v825
    %v836 = vpack.c.b16 %v828, %v827
    %845 = vmatprep.subr.bf16.mxu0 0
    %846 = vmatpush1.bf16.msra.mxu0 %v829
    %847 = vmatprep.subr.bf16.mxu0 0
    %848 = vmatpush1.bf16.msra.mxu0 %v830
    %849 = vmatprep.subr.bf16.mxu0 0
    %850 = vmatpush1.bf16.msra.mxu0 %v831
    %851 = vmatprep.subr.bf16.mxu0 0
    %852 = vmatpush1.bf16.msra.mxu0 %v832
    %853 = vmatprep.subr.bf16.mxu0 0
    %854 = vmatpush1.bf16.msra.mxu0 %v833
    %855 = vmatprep.subr.bf16.mxu0 0
    %856 = vmatpush1.bf16.msra.mxu0 %v834
    %857 = vmatprep.subr.bf16.mxu0 0
    %858 = vmatpush1.bf16.msra.mxu0 %v835
    %859 = vmatprep.subr.bf16.mxu0 0
    %860 = vmatpush1.bf16.msra.mxu0 %v836
    %861 = vmatprep.subr.bf16.mxu0 0
    %862 = vmatpush1.bf16.msra.mxu0 0
    %863 = vmatprep.subr.bf16.mxu0 0
    %864 = vmatpush1.bf16.msra.mxu0 0
    %865 = vmatprep.subr.bf16.mxu0 0
    %866 = vmatpush1.bf16.msra.mxu0 0
    %867 = vmatprep.subr.bf16.mxu0 0
    %868 = vmatpush1.bf16.msra.mxu0 0
    %869 = vmatprep.subr.bf16.mxu0 0
    %870 = vmatpush1.bf16.msra.mxu0 0
    %871 = vmatprep.subr.bf16.mxu0 0
    %872 = vmatpush1.bf16.msra.mxu0 0
    %873 = vmatprep.subr.bf16.mxu0 0
    %874 = vmatpush1.bf16.msra.mxu0 0
    %875 = vmatprep.subr.bf16.mxu0 0
    %876 = vmatpush1.bf16.msra.mxu0 0
    %877 = vmatprep.mubr.bf16.mxu0 0
    %878 = vmatmul.mubr.bf16.gmra.mrb[0].mxu0 %v796
    %v879 = vpop.f32.mrb[0].mxu0
    %v880 = vadd.f32 0.0, %v879
    %v881 = vpop.f32.mrb[0].mxu0
    %v882 = vpop.f32.mrb[0].mxu0
    %v883 = vadd.f32 0.0, %v882
    %v884 = vpop.f32.mrb[0].mxu0
    %885 = vdwg.mxu0
    %v886 = vadd.f32 %v650, %v880
    %v887 = vadd.f32 %v651, %v883
    %v888 = vld [vmem:[#allocation8 + $0x7] sm:$0x1]
    %v889 = vlaneseq
    %v890 = vshrl.u32 %v889, 7
    %v891 = vsub.s32 0, %v890
    %v892 = vrot.slane %v888, %v891
    %v893 = vadd.f32 %v886, %v892
    %v894 = vadd.f32 %v887, %v892
    %v895 = vld [vmem:[#allocation8 + $0x8] sm:$0x1]
    %v896 = vld [vmem:[#allocation8 + $0x9] sm:$0x1]
    %v897 = vsel %vm103, %v893, 0.0
    %898 = vadd.xlane.f32.xlu0 %v897
    %v899 = vpop.xlane.xlu0 %898
    %v900 = vsel %vm103, %v894, 0.0
    %901 = vadd.xlane.f32.xlu0 %v900
    %v902 = vpop.xlane.xlu0 %901
    %v903 = vmul.f32 %v899, %v110
    %v904 = vmul.f32 %v902, %v110
    %v905 = vmul.f32 %v893, %v893
    %v906 = vmul.f32 %v894, %v894
    %v907 = vsel %vm103, %v905, 0.0
    %908 = vadd.xlane.f32.xlu0 %v907
    %v909 = vpop.xlane.xlu0 %908
    %v910 = vsel %vm103, %v906, 0.0
    %911 = vadd.xlane.f32.xlu0 %v910
    %v912 = vpop.xlane.xlu0 %911
    %v913 = vmul.f32 %v909, %v110
    %v914 = vmul.f32 %v912, %v110
    %v915 = vmul.f32 %v903, %v903
    %v916 = vmul.f32 %v904, %v904
    %v917 = vsub.f32 %v913, %v915
    %v918 = vsub.f32 %v914, %v916
    %v919 = vsub.f32 %v893, %v903
    %v920 = vsub.f32 %v894, %v904
    %v921 = vadd.f32 %v917, 1e-05
    %v922 = vadd.f32 %v918, 1e-05
    %v923 = vrsqrt.pop %v921
    %v924 = vrsqrt.pop %v922
    %v925 = vmul.f32 %v919, %v923
    %v926 = vmul.f32 %v920, %v924
    %v927 = vlaneseq
    %v928 = vshrl.u32 %v927, 7
    %v929 = vsub.s32 0, %v928
    %v930 = vrot.slane %v895, %v929
    %v931 = vmul.f32 %v925, %v930
    %v932 = vmul.f32 %v926, %v930
    %v933 = vlaneseq
    %v934 = vshrl.u32 %v933, 7
    %v935 = vsub.s32 0, %v934
    %v936 = vrot.slane %v896, %v935
    %v937 = vadd.f32 %v931, %v936
    %v938 = vadd.f32 %v932, %v936
    %v939 = vld [vmem:[#allocation7 + $0x90] sm:$0xf]
    %v940 = vld [vmem:[#allocation7 + $0x94] sm:$0xf]
    %v941 = vld [vmem:[#allocation7 + $0x98] sm:$0xf]
    %v942 = vld [vmem:[#allocation7 + $0x9c] sm:$0xf]
    %v943 = vpack.c.bf16 %v938, %v937
    %v948 = vunpack.c.l.b16 %v939
    %v949 = vunpack.c.l.b16 %v940
    %v950 = vunpack.c.l.b16 %v941
    %v951 = vunpack.c.l.b16 %v942
    %v952 = vpack.c.b16 %v949, %v948
    %v953 = vpack.c.b16 %v951, %v950
    %v957 = vsel %vm103, %v943, 0
    %959 = vmatprep.subr.bf16.mxu0 0
    %960 = vmatpush1.bf16.msra.mxu0 %v952
    %961 = vmatprep.subr.bf16.mxu0 0
    %962 = vmatpush1.bf16.msra.mxu0 %v953
    %963 = vmatprep.subr.bf16.mxu0 0
    %964 = vmatpush1.bf16.msra.mxu0 0
    %965 = vmatprep.subr.bf16.mxu0 0
    %966 = vmatpush1.bf16.msra.mxu0 0
    %967 = vmatprep.subr.bf16.mxu0 0
    %968 = vmatpush1.bf16.msra.mxu0 0
    %969 = vmatprep.subr.bf16.mxu0 0
    %970 = vmatpush1.bf16.msra.mxu0 0
    %971 = vmatprep.subr.bf16.mxu0 0
    %972 = vmatpush1.bf16.msra.mxu0 0
    %973 = vmatprep.subr.bf16.mxu0 0
    %974 = vmatpush1.bf16.msra.mxu0 0
    %975 = vmatprep.subr.bf16.mxu0 0
    %976 = vmatpush1.bf16.msra.mxu0 0
    %977 = vmatprep.subr.bf16.mxu0 0
    %978 = vmatpush1.bf16.msra.mxu0 0
    %979 = vmatprep.subr.bf16.mxu0 0
    %980 = vmatpush1.bf16.msra.mxu0 0
    %981 = vmatprep.subr.bf16.mxu0 0
    %982 = vmatpush1.bf16.msra.mxu0 0
    %983 = vmatprep.subr.bf16.mxu0 0
    %984 = vmatpush1.bf16.msra.mxu0 0
    %985 = vmatprep.subr.bf16.mxu0 0
    %986 = vmatpush1.bf16.msra.mxu0 0
    %987 = vmatprep.subr.bf16.mxu0 0
    %988 = vmatpush1.bf16.msra.mxu0 0
    %989 = vmatprep.subr.bf16.mxu0 0
    %990 = vmatpush1.bf16.msra.mxu0 0
    %991 = vmatprep.mubr.bf16.mxu0 0
    %992 = vmatmul.mubr.bf16.gmra.mrb[0].mxu0 %v957
    %v993 = vpop.f32.mrb[0].mxu0
    %v994 = vadd.f32 0.0, %v993
    %v995 = vpop.f32.mrb[0].mxu0
    %v996 = vpop.f32.mrb[0].mxu0
    %v997 = vadd.f32 0.0, %v996
    %v998 = vpop.f32.mrb[0].mxu0
    %999 = vdwg.mxu0
    %1002 = vrot.lane.b32.xlu0 %v994, 96
    %v1003 = vpop.permute.xlu0 %1002
    %1004 = vrot.lane.b32.xlu0 %v997, 96
    %v1005 = vpop.permute.xlu0 %1004
    %vm1006 = vcmask 130048
    %v1007 = vsel %vm1006, %v994, 0
    %v1009 = vsel %vm1006, %v997, 0
    %v1011 = vsel %vm1006, %v1003, 0
    %v1013 = vsel %vm1006, %v1005, 0
    %1015 = vmatprep.subr.mxu0 0.0
    %1016 = vmatpush1.xpose.msra.mxu0 %v1011
    %1017 = vmatprep.subr.mxu0 0.0
    %1018 = vmatpush1.xpose.msra.mxu0 %v1013
    %1019 = vmatprep.subr.mxu0 0.0
    %1020 = vmatpush1.xpose.msra.mxu0 0.0
    %1021 = vmatprep.subr.mxu0 0.0
    %1022 = vmatpush1.xpose.msra.mxu0 0.0
    %1023 = vmatprep.subr.mxu0 0.0
    %1024 = vmatpush1.xpose.msra.mxu0 0.0
    %1025 = vmatprep.subr.mxu0 0.0
    %1026 = vmatpush1.xpose.msra.mxu0 0.0
    %1027 = vmatprep.subr.mxu0 0.0
    %1028 = vmatpush1.xpose.msra.mxu0 0.0
    %1029 = vmatprep.subr.mxu0 0.0
    %1030 = vmatpush1.xpose.msra.mxu0 0.0
    %1031 = vmatprep.subr.mxu0 0.0
    %1032 = vmatpush1.xpose.msra.mxu0 0.0
    %1033 = vmatprep.subr.mxu0 0.0
    %1034 = vmatpush1.xpose.msra.mxu0 0.0
    %1035 = vmatprep.subr.mxu0 0.0
    %1036 = vmatpush1.xpose.msra.mxu0 0.0
    %1037 = vmatprep.subr.mxu0 0.0
    %1038 = vmatpush1.xpose.msra.mxu0 0.0
    %1039 = vmatprep.subr.mxu0 0.0
    %1040 = vmatpush1.xpose.msra.mxu0 0.0
    %1041 = vmatprep.subr.mxu0 0.0
    %1042 = vmatpush1.xpose.msra.mxu0 0.0
    %1043 = vmatprep.subr.mxu0 0.0
    %1044 = vmatpush1.xpose.msra.mxu0 0.0
    %1045 = vmatprep.subr.mxu0 0.0
    %1046 = vmatpush1.xpose.msra.mxu0 0.0
    %1047 = vmatprep.subr.mxu0 0.0
    %1048 = vmatpush1.xpose.msra.mxu0 0.0
    %1049 = vmatprep.subr.mxu0 0.0
    %1050 = vmatpush1.xpose.msra.mxu0 0.0
    %1051 = vmatprep.subr.mxu0 0.0
    %1052 = vmatpush1.xpose.msra.mxu0 0.0
    %1053 = vmatprep.subr.mxu0 0.0
    %1054 = vmatpush1.xpose.msra.mxu0 0.0
    %1055 = vmatprep.subr.mxu0 0.0
    %1056 = vmatpush1.xpose.msra.mxu0 0.0
    %1057 = vmatprep.subr.mxu0 0.0
    %1058 = vmatpush1.xpose.msra.mxu0 0.0
    %1059 = vmatprep.subr.mxu0 0.0
    %1060 = vmatpush1.xpose.msra.mxu0 0.0
    %1061 = vmatprep.subr.mxu0 0.0
    %1062 = vmatpush1.xpose.msra.mxu0 0.0
    %1063 = vmatprep.subr.mxu0 0.0
    %1064 = vmatpush1.xpose.msra.mxu0 0.0
    %1065 = vmatprep.subr.mxu0 0.0
    %1066 = vmatpush1.xpose.msra.mxu0 0.0
    %1067 = vmatprep.subr.mxu0 0.0
    %1068 = vmatpush1.xpose.msra.mxu0 0.0
    %1069 = vmatprep.subr.mxu0 0.0
    %1070 = vmatpush1.xpose.msra.mxu0 0.0
    %1071 = vmatprep.subr.mxu0 0.0
    %1072 = vmatpush1.xpose.msra.mxu0 0.0
    %1073 = vmatprep.subr.mxu0 0.0
    %1074 = vmatpush1.xpose.msra.mxu0 0.0
    %1075 = vmatprep.subr.mxu0 0.0
    %1076 = vmatpush1.xpose.msra.mxu0 0.0
    %1077 = vmatprep.subr.mxu0 0.0
    %1078 = vmatpush1.xpose.msra.mxu0 0.0
    %1079 = vmatprep.mubr.f32.mxu0 0.0
    %1080 = vmatmul.mubr.f32.gmra.mrb[0].mxu0 %v1007
    %v1081 = vpop.f32.mrb[0].mxu0
    %v1082 = vadd.f32 0.0, %v1081
    %v1083 = vpop.f32.mrb[0].mxu0
    %1084 = vmatprep.mubr.f32.mxu0 0.0
    %1085 = vmatmul.mubr.f32.gmra.mrb[0].mxu0 %v1009
    %v1086 = vpop.f32.mrb[0].mxu0
    %v1087 = vadd.f32 0.0, %v1086
    %v1088 = vpop.f32.mrb[0].mxu0
    %1089 = vdwg.mxu0
    %v1090 = vmul.f32 %v1082, 0.25
    %v1091 = vmul.f32 %v1087, 0.25
    %v1092 = vadd.f32 %v1090, %v96
    %v1093 = vadd.f32 %v1091, %v97
    %v1094 = vsel %vm1006, %v1092, -inf
    %1095 = vmax.xlane.f32.xlu0 %v1094
    %v1096 = vpop.xlane.xlu0 %1095
    %v1097 = vsel %vm1006, %v1093, -inf
    %1098 = vmax.xlane.f32.xlu0 %v1097
    %v1099 = vpop.xlane.xlu0 %1098
    %v1100 = vsub.f32 %v1092, %v1096
    %v1101 = vsub.f32 %v1093, %v1099
    %v1102 = vmul.f32 %v1100, 1.442695
    %v1103 = vpow.pop %v1102
    %v1104 = vmul.f32 %v1101, 1.442695
    %v1105 = vpow.pop %v1104
    %v1106 = vsel %vm1006, %v1103, 0.0
    %1107 = vadd.xlane.f32.xlu0 %v1106
    %v1108 = vpop.xlane.xlu0 %1107
    %v1109 = vsel %vm1006, %v1105, 0.0
    %1110 = vadd.xlane.f32.xlu0 %v1109
    %v1111 = vpop.xlane.xlu0 %1110
    %v1112 = vrcp.pop %v1108
    %v1113 = vmul.f32 %v1103, %v1112
    %v1114 = vrcp.pop %v1111
    %v1115 = vmul.f32 %v1105, %v1114
    %1116 = vrot.lane.b32.xlu0 %v994, 64
    %v1117 = vpop.permute.xlu0 %1116
    %1118 = vrot.lane.b32.xlu0 %v997, 64
    %v1119 = vpop.permute.xlu0 %1118
    %v1123 = vsel %vm1006, %v1113, 0
    %v1126 = vsel %vm1006, %v1115, 0
    %1128 = vmatprep.subr.mxu0 0.0
    %1129 = vmatpush1.msra.mxu0 %v1117
    %1130 = vmatprep.subr.mxu0 0.0
    %1131 = vmatpush1.msra.mxu0 %v1119
    %1132 = vmatprep.subr.mxu0 0.0
    %1133 = vmatpush1.msra.mxu0 0.0
    %1134 = vmatprep.subr.mxu0 0.0
    %1135 = vmatpush1.msra.mxu0 0.0
    %1136 = vmatprep.subr.mxu0 0.0
    %1137 = vmatpush1.msra.mxu0 0.0
    %1138 = vmatprep.subr.mxu0 0.0
    %1139 = vmatpush1.msra.mxu0 0.0
    %1140 = vmatprep.subr.mxu0 0.0
    %1141 = vmatpush1.msra.mxu0 0.0
    %1142 = vmatprep.subr.mxu0 0.0
    %1143 = vmatpush1.msra.mxu0 0.0
    %1144 = vmatprep.subr.mxu0 0.0
    %1145 = vmatpush1.msra.mxu0 0.0
    %1146 = vmatprep.subr.mxu0 0.0
    %1147 = vmatpush1.msra.mxu0 0.0
    %1148 = vmatprep.subr.mxu0 0.0
    %1149 = vmatpush1.msra.mxu0 0.0
    %1150 = vmatprep.subr.mxu0 0.0
    %1151 = vmatpush1.msra.mxu0 0.0
    %1152 = vmatprep.subr.mxu0 0.0
    %1153 = vmatpush1.msra.mxu0 0.0
    %1154 = vmatprep.subr.mxu0 0.0
    %1155 = vmatpush1.msra.mxu0 0.0
    %1156 = vmatprep.subr.mxu0 0.0
    %1157 = vmatpush1.msra.mxu0 0.0
    %1158 = vmatprep.subr.mxu0 0.0
    %1159 = vmatpush1.msra.mxu0 0.0
    %1160 = vmatprep.subr.mxu0 0.0
    %1161 = vmatpush1.msra.mxu0 0.0
    %1162 = vmatprep.subr.mxu0 0.0
    %1163 = vmatpush1.msra.mxu0 0.0
    %1164 = vmatprep.subr.mxu0 0.0
    %1165 = vmatpush1.msra.mxu0 0.0
    %1166 = vmatprep.subr.mxu0 0.0
    %1167 = vmatpush1.msra.mxu0 0.0
    %1168 = vmatprep.subr.mxu0 0.0
    %1169 = vmatpush1.msra.mxu0 0.0
    %1170 = vmatprep.subr.mxu0 0.0
    %1171 = vmatpush1.msra.mxu0 0.0
    %1172 = vmatprep.subr.mxu0 0.0
    %1173 = vmatpush1.msra.mxu0 0.0
    %1174 = vmatprep.subr.mxu0 0.0
    %1175 = vmatpush1.msra.mxu0 0.0
    %1176 = vmatprep.subr.mxu0 0.0
    %1177 = vmatpush1.msra.mxu0 0.0
    %1178 = vmatprep.subr.mxu0 0.0
    %1179 = vmatpush1.msra.mxu0 0.0
    %1180 = vmatprep.subr.mxu0 0.0
    %1181 = vmatpush1.msra.mxu0 0.0
    %1182 = vmatprep.subr.mxu0 0.0
    %1183 = vmatpush1.msra.mxu0 0.0
    %1184 = vmatprep.subr.mxu0 0.0
    %1185 = vmatpush1.msra.mxu0 0.0
    %1186 = vmatprep.subr.mxu0 0.0
    %1187 = vmatpush1.msra.mxu0 0.0
    %1188 = vmatprep.subr.mxu0 0.0
    %1189 = vmatpush1.msra.mxu0 0.0
    %1190 = vmatprep.subr.mxu0 0.0
    %1191 = vmatpush1.msra.mxu0 0.0
    %1192 = vmatprep.mubr.f32.mxu0 0.0
    %1193 = vmatmul.mubr.f32.gmra.mrb[0].mxu0 %v1123
    %v1194 = vpop.f32.mrb[0].mxu0
    %v1195 = vadd.f32 0.0, %v1194
    %v1196 = vpop.f32.mrb[0].mxu0
    %1197 = vmatprep.mubr.f32.mxu0 0.0
    %1198 = vmatmul.mubr.f32.gmra.mrb[0].mxu0 %v1126
    %v1199 = vpop.f32.mrb[0].mxu0
    %v1200 = vadd.f32 0.0, %v1199
    %v1201 = vpop.f32.mrb[0].mxu0
    %1202 = vdwg.mxu0
    %1203 = vrot.lane.b32.xlu0 %v994, 112
    %v1204 = vpop.permute.xlu0 %1203
    %1205 = vrot.lane.b32.xlu0 %v997, 112
    %v1206 = vpop.permute.xlu0 %1205
    %1207 = vrot.lane.b32.xlu0 %v994, 80
    %v1208 = vpop.permute.xlu0 %1207
    %1209 = vrot.lane.b32.xlu0 %v997, 80
    %v1210 = vpop.permute.xlu0 %1209
    %v1211 = vsel %vm1006, %v1204, 0
    %v1213 = vsel %vm1006, %v1206, 0
    %v1215 = vsel %vm1006, %v1208, 0
    %v1217 = vsel %vm1006, %v1210, 0
    %1219 = vmatprep.subr.mxu0 0.0
    %1220 = vmatpush1.xpose.msra.mxu0 %v1215
    %1221 = vmatprep.subr.mxu0 0.0
    %1222 = vmatpush1.xpose.msra.mxu0 %v1217
    %1223 = vmatprep.subr.mxu0 0.0
    %1224 = vmatpush1.xpose.msra.mxu0 0.0
    %1225 = vmatprep.subr.mxu0 0.0
    %1226 = vmatpush1.xpose.msra.mxu0 0.0
    %1227 = vmatprep.subr.mxu0 0.0
    %1228 = vmatpush1.xpose.msra.mxu0 0.0
    %1229 = vmatprep.subr.mxu0 0.0
    %1230 = vmatpush1.xpose.msra.mxu0 0.0
    %1231 = vmatprep.subr.mxu0 0.0
    %1232 = vmatpush1.xpose.msra.mxu0 0.0
    %1233 = vmatprep.subr.mxu0 0.0
    %1234 = vmatpush1.xpose.msra.mxu0 0.0
    %1235 = vmatprep.subr.mxu0 0.0
    %1236 = vmatpush1.xpose.msra.mxu0 0.0
    %1237 = vmatprep.subr.mxu0 0.0
    %1238 = vmatpush1.xpose.msra.mxu0 0.0
    %1239 = vmatprep.subr.mxu0 0.0
    %1240 = vmatpush1.xpose.msra.mxu0 0.0
    %1241 = vmatprep.subr.mxu0 0.0
    %1242 = vmatpush1.xpose.msra.mxu0 0.0
    %1243 = vmatprep.subr.mxu0 0.0
    %1244 = vmatpush1.xpose.msra.mxu0 0.0
    %1245 = vmatprep.subr.mxu0 0.0
    %1246 = vmatpush1.xpose.msra.mxu0 0.0
    %1247 = vmatprep.subr.mxu0 0.0
    %1248 = vmatpush1.xpose.msra.mxu0 0.0
    %1249 = vmatprep.subr.mxu0 0.0
    %1250 = vmatpush1.xpose.msra.mxu0 0.0
    %1251 = vmatprep.subr.mxu0 0.0
    %1252 = vmatpush1.xpose.msra.mxu0 0.0
    %1253 = vmatprep.subr.mxu0 0.0
    %1254 = vmatpush1.xpose.msra.mxu0 0.0
    %1255 = vmatprep.subr.mxu0 0.0
    %1256 = vmatpush1.xpose.msra.mxu0 0.0
    %1257 = vmatprep.subr.mxu0 0.0
    %1258 = vmatpush1.xpose.msra.mxu0 0.0
    %1259 = vmatprep.subr.mxu0 0.0
    %1260 = vmatpush1.xpose.msra.mxu0 0.0
    %1261 = vmatprep.subr.mxu0 0.0
    %1262 = vmatpush1.xpose.msra.mxu0 0.0
    %1263 = vmatprep.subr.mxu0 0.0
    %1264 = vmatpush1.xpose.msra.mxu0 0.0
    %1265 = vmatprep.subr.mxu0 0.0
    %1266 = vmatpush1.xpose.msra.mxu0 0.0
    %1267 = vmatprep.subr.mxu0 0.0
    %1268 = vmatpush1.xpose.msra.mxu0 0.0
    %1269 = vmatprep.subr.mxu0 0.0
    %1270 = vmatpush1.xpose.msra.mxu0 0.0
    %1271 = vmatprep.subr.mxu0 0.0
    %1272 = vmatpush1.xpose.msra.mxu0 0.0
    %1273 = vmatprep.subr.mxu0 0.0
    %1274 = vmatpush1.xpose.msra.mxu0 0.0
    %1275 = vmatprep.subr.mxu0 0.0
    %1276 = vmatpush1.xpose.msra.mxu0 0.0
    %1277 = vmatprep.subr.mxu0 0.0
    %1278 = vmatpush1.xpose.msra.mxu0 0.0
    %1279 = vmatprep.subr.mxu0 0.0
    %1280 = vmatpush1.xpose.msra.mxu0 0.0
    %1281 = vmatprep.subr.mxu0 0.0
    %1282 = vmatpush1.xpose.msra.mxu0 0.0
    %1283 = vmatprep.mubr.f32.mxu0 0.0
    %1284 = vmatmul.mubr.f32.gmra.mrb[0].mxu0 %v1211
    %v1285 = vpop.f32.mrb[0].mxu0
    %v1286 = vadd.f32 0.0, %v1285
    %v1287 = vpop.f32.mrb[0].mxu0
    %1288 = vmatprep.mubr.f32.mxu0 0.0
    %1289 = vmatmul.mubr.f32.gmra.mrb[0].mxu0 %v1213
    %v1290 = vpop.f32.mrb[0].mxu0
    %v1291 = vadd.f32 0.0, %v1290
    %v1292 = vpop.f32.mrb[0].mxu0
    %1293 = vdwg.mxu0
    %v1294 = vmul.f32 %v1286, 0.25
    %v1295 = vmul.f32 %v1291, 0.25
    %v1296 = vadd.f32 %v1294, %v96
    %v1297 = vadd.f32 %v1295, %v97
    %v1298 = vsel %vm1006, %v1296, -inf
    %1299 = vmax.xlane.f32.xlu0 %v1298
    %v1300 = vpop.xlane.xlu0 %1299
    %v1301 = vsel %vm1006, %v1297, -inf
    %1302 = vmax.xlane.f32.xlu0 %v1301
    %v1303 = vpop.xlane.xlu0 %1302
    %v1304 = vsub.f32 %v1296, %v1300
    %v1305 = vsub.f32 %v1297, %v1303
    %v1306 = vmul.f32 %v1304, 1.442695
    %v1307 = vpow.pop %v1306
    %v1308 = vmul.f32 %v1305, 1.442695
    %v1309 = vpow.pop %v1308
    %v1310 = vsel %vm1006, %v1307, 0.0
    %1311 = vadd.xlane.f32.xlu0 %v1310
    %v1312 = vpop.xlane.xlu0 %1311
    %v1313 = vsel %vm1006, %v1309, 0.0
    %1314 = vadd.xlane.f32.xlu0 %v1313
    %v1315 = vpop.xlane.xlu0 %1314
    %v1316 = vrcp.pop %v1312
    %v1317 = vmul.f32 %v1307, %v1316
    %v1318 = vrcp.pop %v1315
    %v1319 = vmul.f32 %v1309, %v1318
    %1320 = vrot.lane.b32.xlu0 %v994, 48
    %v1321 = vpop.permute.xlu0 %1320
    %1322 = vrot.lane.b32.xlu0 %v997, 48
    %v1323 = vpop.permute.xlu0 %1322
    %v1327 = vsel %vm1006, %v1317, 0
    %v1330 = vsel %vm1006, %v1319, 0
    %1332 = vmatprep.subr.mxu0 0.0
    %1333 = vmatpush1.msra.mxu0 %v1321
    %1334 = vmatprep.subr.mxu0 0.0
    %1335 = vmatpush1.msra.mxu0 %v1323
    %1336 = vmatprep.subr.mxu0 0.0
    %1337 = vmatpush1.msra.mxu0 0.0
    %1338 = vmatprep.subr.mxu0 0.0
    %1339 = vmatpush1.msra.mxu0 0.0
    %1340 = vmatprep.subr.mxu0 0.0
    %1341 = vmatpush1.msra.mxu0 0.0
    %1342 = vmatprep.subr.mxu0 0.0
    %1343 = vmatpush1.msra.mxu0 0.0
    %1344 = vmatprep.subr.mxu0 0.0
    %1345 = vmatpush1.msra.mxu0 0.0
    %1346 = vmatprep.subr.mxu0 0.0
    %1347 = vmatpush1.msra.mxu0 0.0
    %1348 = vmatprep.subr.mxu0 0.0
    %1349 = vmatpush1.msra.mxu0 0.0
    %1350 = vmatprep.subr.mxu0 0.0
    %1351 = vmatpush1.msra.mxu0 0.0
    %1352 = vmatprep.subr.mxu0 0.0
    %1353 = vmatpush1.msra.mxu0 0.0
    %1354 = vmatprep.subr.mxu0 0.0
    %1355 = vmatpush1.msra.mxu0 0.0
    %1356 = vmatprep.subr.mxu0 0.0
    %1357 = vmatpush1.msra.mxu0 0.0
    %1358 = vmatprep.subr.mxu0 0.0
    %1359 = vmatpush1.msra.mxu0 0.0
    %1360 = vmatprep.subr.mxu0 0.0
    %1361 = vmatpush1.msra.mxu0 0.0
    %1362 = vmatprep.subr.mxu0 0.0
    %1363 = vmatpush1.msra.mxu0 0.0
    %1364 = vmatprep.subr.mxu0 0.0
    %1365 = vmatpush1.msra.mxu0 0.0
    %1366 = vmatprep.subr.mxu0 0.0
    %1367 = vmatpush1.msra.mxu0 0.0
    %1368 = vmatprep.subr.mxu0 0.0
    %1369 = vmatpush1.msra.mxu0 0.0
    %1370 = vmatprep.subr.mxu0 0.0
    %1371 = vmatpush1.msra.mxu0 0.0
    %1372 = vmatprep.subr.mxu0 0.0
    %1373 = vmatpush1.msra.mxu0 0.0
    %1374 = vmatprep.subr.mxu0 0.0
    %1375 = vmatpush1.msra.mxu0 0.0
    %1376 = vmatprep.subr.mxu0 0.0
    %1377 = vmatpush1.msra.mxu0 0.0
    %1378 = vmatprep.subr.mxu0 0.0
    %1379 = vmatpush1.msra.mxu0 0.0
    %1380 = vmatprep.subr.mxu0 0.0
    %1381 = vmatpush1.msra.mxu0 0.0
    %1382 = vmatprep.subr.mxu0 0.0
    %1383 = vmatpush1.msra.mxu0 0.0
    %1384 = vmatprep.subr.mxu0 0.0
    %1385 = vmatpush1.msra.mxu0 0.0
    %1386 = vmatprep.subr.mxu0 0.0
    %1387 = vmatpush1.msra.mxu0 0.0
    %1388 = vmatprep.subr.mxu0 0.0
    %1389 = vmatpush1.msra.mxu0 0.0
    %1390 = vmatprep.subr.mxu0 0.0
    %1391 = vmatpush1.msra.mxu0 0.0
    %1392 = vmatprep.subr.mxu0 0.0
    %1393 = vmatpush1.msra.mxu0 0.0
    %1394 = vmatprep.subr.mxu0 0.0
    %1395 = vmatpush1.msra.mxu0 0.0
    %1396 = vmatprep.mubr.f32.mxu0 0.0
    %1397 = vmatmul.mubr.f32.gmra.mrb[0].mxu0 %v1327
    %v1398 = vpop.f32.mrb[0].mxu0
    %v1399 = vadd.f32 0.0, %v1398
    %v1400 = vpop.f32.mrb[0].mxu0
    %1401 = vmatprep.mubr.f32.mxu0 0.0
    %1402 = vmatmul.mubr.f32.gmra.mrb[0].mxu0 %v1330
    %v1403 = vpop.f32.mrb[0].mxu0
    %v1404 = vadd.f32 0.0, %v1403
    %v1405 = vpop.f32.mrb[0].mxu0
    %1406 = vdwg.mxu0
    %1409 = vrot.lane.b32.xlu0 %v1399, 16
    %v1410 = vpop.permute.xlu0 %1409
    %1411 = vrot.lane.b32.xlu0 %v1404, 16
    %v1412 = vpop.permute.xlu0 %1411
    %v1415 = vsel %vm1006, %v1195, %v1410
    %v1416 = vsel %vm1006, %v1200, %v1412
    %v1417 = vld [vmem:[#allocation7 + $0xa0] sm:$0xf]
    %v1418 = vld [vmem:[#allocation7 + $0xa4] sm:$0xf]
    %v1419 = vld [vmem:[#allocation7 + $0xa8] sm:$0xf]
    %v1420 = vld [vmem:[#allocation7 + $0xac] sm:$0xf]
    %v1421 = vpack.c.bf16 %v1416, %v1415
    %v1426 = vunpack.c.l.b16 %v1417
    %v1427 = vunpack.c.l.b16 %v1418
    %v1428 = vunpack.c.l.b16 %v1419
    %v1429 = vunpack.c.l.b16 %v1420
    %v1430 = vpack.c.b16 %v1427, %v1426
    %v1431 = vpack.c.b16 %v1429, %v1428
    %v1435 = vsel %vm103, %v1421, 0
    %1437 = vmatprep.subr.bf16.mxu0 0
    %1438 = vmatpush1.bf16.msra.mxu0 %v1430
    %1439 = vmatprep.subr.bf16.mxu0 0
    %1440 = vmatpush1.bf16.msra.mxu0 %v1431
    %1441 = vmatprep.subr.bf16.mxu0 0
    %1442 = vmatpush1.bf16.msra.mxu0 0
    %1443 = vmatprep.subr.bf16.mxu0 0
    %1444 = vmatpush1.bf16.msra.mxu0 0
    %1445 = vmatprep.subr.bf16.mxu0 0
    %1446 = vmatpush1.bf16.msra.mxu0 0
    %1447 = vmatprep.subr.bf16.mxu0 0
    %1448 = vmatpush1.bf16.msra.mxu0 0
    %1449 = vmatprep.subr.bf16.mxu0 0
    %1450 = vmatpush1.bf16.msra.mxu0 0
    %1451 = vmatprep.subr.bf16.mxu0 0
    %1452 = vmatpush1.bf16.msra.mxu0 0
    %1453 = vmatprep.subr.bf16.mxu0 0
    %1454 = vmatpush1.bf16.msra.mxu0 0
    %1455 = vmatprep.subr.bf16.mxu0 0
    %1456 = vmatpush1.bf16.msra.mxu0 0
    %1457 = vmatprep.subr.bf16.mxu0 0
    %1458 = vmatpush1.bf16.msra.mxu0 0
    %1459 = vmatprep.subr.bf16.mxu0 0
    %1460 = vmatpush1.bf16.msra.mxu0 0
    %1461 = vmatprep.subr.bf16.mxu0 0
    %1462 = vmatpush1.bf16.msra.mxu0 0
    %1463 = vmatprep.subr.bf16.mxu0 0
    %1464 = vmatpush1.bf16.msra.mxu0 0
    %1465 = vmatprep.subr.bf16.mxu0 0
    %1466 = vmatpush1.bf16.msra.mxu0 0
    %1467 = vmatprep.subr.bf16.mxu0 0
    %1468 = vmatpush1.bf16.msra.mxu0 0
    %1469 = vmatprep.mubr.bf16.mxu0 0
    %1470 = vmatmul.mubr.bf16.gmra.mrb[0].mxu0 %v1435
    %v1471 = vpop.f32.mrb[0].mxu0
    %v1472 = vadd.f32 0.0, %v1471
    %v1473 = vpop.f32.mrb[0].mxu0
    %v1474 = vpop.f32.mrb[0].mxu0
    %v1475 = vadd.f32 0.0, %v1474
    %v1476 = vpop.f32.mrb[0].mxu0
    %1477 = vdwg.mxu0
    %v1478 = vadd.f32 %v893, %v1472
    %v1479 = vadd.f32 %v894, %v1475
    %v1480 = vld [vmem:[#allocation8 + $0xa] sm:$0x1]
    %v1481 = vld [vmem:[#allocation8 + $0xb] sm:$0x1]
    %v1482 = vsel %vm103, %v1478, 0.0
    %1483 = vadd.xlane.f32.xlu0 %v1482
    %v1484 = vpop.xlane.xlu0 %1483
    %v1485 = vsel %vm103, %v1479, 0.0
    %1486 = vadd.xlane.f32.xlu0 %v1485
    %v1487 = vpop.xlane.xlu0 %1486
    %v1488 = vmul.f32 %v1484, %v110
    %v1489 = vmul.f32 %v1487, %v110
    %v1490 = vmul.f32 %v1478, %v1478
    %v1491 = vmul.f32 %v1479, %v1479
    %v1492 = vsel %vm103, %v1490, 0.0
    %1493 = vadd.xlane.f32.xlu0 %v1492
    %v1494 = vpop.xlane.xlu0 %1493
    %v1495 = vsel %vm103, %v1491, 0.0
    %1496 = vadd.xlane.f32.xlu0 %v1495
    %v1497 = vpop.xlane.xlu0 %1496
    %v1498 = vmul.f32 %v1494, %v110
    %v1499 = vmul.f32 %v1497, %v110
    %v1500 = vmul.f32 %v1488, %v1488
    %v1501 = vmul.f32 %v1489, %v1489
    %v1502 = vsub.f32 %v1498, %v1500
    %v1503 = vsub.f32 %v1499, %v1501
    %v1504 = vsub.f32 %v1478, %v1488
    %v1505 = vsub.f32 %v1479, %v1489
    %v1506 = vadd.f32 %v1502, 1e-05
    %v1507 = vadd.f32 %v1503, 1e-05
    %v1508 = vrsqrt.pop %v1506
    %v1509 = vrsqrt.pop %v1507
    %v1510 = vmul.f32 %v1504, %v1508
    %v1511 = vmul.f32 %v1505, %v1509
    %v1512 = vlaneseq
    %v1513 = vshrl.u32 %v1512, 7
    %v1514 = vsub.s32 0, %v1513
    %v1515 = vrot.slane %v1480, %v1514
    %v1516 = vmul.f32 %v1510, %v1515
    %v1517 = vmul.f32 %v1511, %v1515
    %v1518 = vlaneseq
    %v1519 = vshrl.u32 %v1518, 7
    %v1520 = vsub.s32 0, %v1519
    %v1521 = vrot.slane %v1481, %v1520
    %v1522 = vadd.f32 %v1516, %v1521
    %v1523 = vadd.f32 %v1517, %v1521
    %v1524 = vld [vmem:[#allocation7 + $0xb0] sm:$0xf]
    %v1525 = vld [vmem:[#allocation7 + $0xb4] sm:$0xf]
    %v1526 = vld [vmem:[#allocation7 + $0xb8] sm:$0xf]
    %v1527 = vld [vmem:[#allocation7 + $0xbc] sm:$0xf]
    %v1528 = vpack.c.bf16 %v1523, %v1522
    %v1529 = vld [vmem:[#allocation8 + $0xc] sm:$0x1]
    %v1530 = vlaneseq
    %v1531 = vshrl.u32 %v1530, 7
    %v1532 = vsub.s32 0, %v1531
    %v1533 = vrot.slane %v1529, %v1532
    %v1538 = vunpack.c.l.b16 %v1524
    %v1539 = vunpack.c.l.b16 %v1525
    %v1540 = vunpack.c.l.b16 %v1526
    %v1541 = vunpack.c.l.b16 %v1527
    %v1542 = vpack.c.b16 %v1539, %v1538
    %v1543 = vpack.c.b16 %v1541, %v1540
    %v1547 = vsel %vm103, %v1528, 0
    %1549 = vmatprep.subr.bf16.mxu0 0
    %1550 = vmatpush1.bf16.msra.mxu0 %v1542
    %1551 = vmatprep.subr.bf16.mxu0 0
    %1552 = vmatpush1.bf16.msra.mxu0 %v1543
    %1553 = vmatprep.subr.bf16.mxu0 0
    %1554 = vmatpush1.bf16.msra.mxu0 0
    %1555 = vmatprep.subr.bf16.mxu0 0
    %1556 = vmatpush1.bf16.msra.mxu0 0
    %1557 = vmatprep.subr.bf16.mxu0 0
    %1558 = vmatpush1.bf16.msra.mxu0 0
    %1559 = vmatprep.subr.bf16.mxu0 0
    %1560 = vmatpush1.bf16.msra.mxu0 0
    %1561 = vmatprep.subr.bf16.mxu0 0
    %1562 = vmatpush1.bf16.msra.mxu0 0
    %1563 = vmatprep.subr.bf16.mxu0 0
    %1564 = vmatpush1.bf16.msra.mxu0 0
    %1565 = vmatprep.subr.bf16.mxu0 0
    %1566 = vmatpush1.bf16.msra.mxu0 0
    %1567 = vmatprep.subr.bf16.mxu0 0
    %1568 = vmatpush1.bf16.msra.mxu0 0
    %1569 = vmatprep.subr.bf16.mxu0 0
    %1570 = vmatpush1.bf16.msra.mxu0 0
    %1571 = vmatprep.subr.bf16.mxu0 0
    %1572 = vmatpush1.bf16.msra.mxu0 0
    %1573 = vmatprep.subr.bf16.mxu0 0
    %1574 = vmatpush1.bf16.msra.mxu0 0
    %1575 = vmatprep.subr.bf16.mxu0 0
    %1576 = vmatpush1.bf16.msra.mxu0 0
    %1577 = vmatprep.subr.bf16.mxu0 0
    %1578 = vmatpush1.bf16.msra.mxu0 0
    %1579 = vmatprep.subr.bf16.mxu0 0
    %1580 = vmatpush1.bf16.msra.mxu0 0
    %1581 = vmatprep.mubr.bf16.mxu0 0
    %1582 = vmatmul.mubr.bf16.gmra.mrb[0].mxu0 %v1547
    %v1583 = vpop.f32.mrb[0].mxu0
    %v1584 = vadd.f32 %v1533, %v1583
    %v1585 = vpop.f32.mrb[0].mxu0
    %v1586 = vpop.f32.mrb[0].mxu0
    %v1587 = vadd.f32 %v1533, %v1586
    %v1588 = vpop.f32.mrb[0].mxu0
    %1589 = vdwg.mxu0
    %v1590 = vmul.f32 %v1584, 0.5
    %v1591 = vmul.f32 %v1587, 0.5
    %v1592 = vmul.f32 %v1584, 0.044715
    %v1593 = vmul.f32 %v1587, 0.044715
    %v1594 = vmul.f32 %v1592, %v1584
    %v1595 = vmul.f32 %v1593, %v1587
    %v1596 = vmul.f32 %v1594, %v1584
    %v1597 = vmul.f32 %v1595, %v1587
    %v1598 = vadd.f32 %v1584, %v1596
    %v1599 = vadd.f32 %v1587, %v1597
    %v1600 = vmul.f32 %v1598, 0.7978846
    %v1601 = vmul.f32 %v1599, 0.7978846
    %v1602 = vtanh.pop %v1600
    %v1603 = vtanh.pop %v1601
    %v1604 = vadd.f32 %v1602, 1.0
    %v1605 = vadd.f32 %v1603, 1.0
    %v1606 = vmul.f32 %v1590, %v1604
    %v1607 = vmul.f32 %v1591, %v1605
    %v1608 = vld [vmem:[#allocation7 + $0xc0] sm:$0xf]
    %v1609 = vld [vmem:[#allocation7 + $0xc4] sm:$0xf]
    %v1610 = vld [vmem:[#allocation7 + $0xc8] sm:$0xf]
    %v1611 = vld [vmem:[#allocation7 + $0xcc] sm:$0xf]
    %v1612 = vld [vmem:[#allocation7 + $0xd0] sm:$0xf]
    %v1613 = vld [vmem:[#allocation7 + $0xd4] sm:$0xf]
    %v1614 = vld [vmem:[#allocation7 + $0xd8] sm:$0xf]
    %v1615 = vld [vmem:[#allocation7 + $0xdc] sm:$0xf]
    %v1616 = vld [vmem:[#allocation7 + $0xe0] sm:$0xf]
    %v1617 = vld [vmem:[#allocation7 + $0xe4] sm:$0xf]
    %v1618 = vld [vmem:[#allocation7 + $0xe8] sm:$0xf]
    %v1619 = vld [vmem:[#allocation7 + $0xec] sm:$0xf]
    %v1620 = vld [vmem:[#allocation7 + $0xf0] sm:$0xf]
    %v1621 = vld [vmem:[#allocation7 + $0xf4] sm:$0xf]
    %v1622 = vld [vmem:[#allocation7 + $0xf8] sm:$0xf]
    %v1623 = vld [vmem:[#allocation7 + $0xfc] sm:$0xf]
    %v1624 = vpack.c.bf16 %v1607, %v1606
    %v1641 = vunpack.c.l.b16 %v1608
    %v1642 = vunpack.c.l.b16 %v1609
    %v1643 = vunpack.c.l.b16 %v1610
    %v1644 = vunpack.c.l.b16 %v1611
    %v1645 = vunpack.c.l.b16 %v1612
    %v1646 = vunpack.c.l.b16 %v1613
    %v1647 = vunpack.c.l.b16 %v1614
    %v1648 = vunpack.c.l.b16 %v1615
    %v1649 = vunpack.c.l.b16 %v1616
    %v1650 = vunpack.c.l.b16 %v1617
    %v1651 = vunpack.c.l.b16 %v1618
    %v1652 = vunpack.c.l.b16 %v1619
    %v1653 = vunpack.c.l.b16 %v1620
    %v1654 = vunpack.c.l.b16 %v1621
    %v1655 = vunpack.c.l.b16 %v1622
    %v1656 = vunpack.c.l.b16 %v1623
    %v1657 = vpack.c.b16 %v1642, %v1641
    %v1658 = vpack.c.b16 %v1644, %v1643
    %v1659 = vpack.c.b16 %v1646, %v1645
    %v1660 = vpack.c.b16 %v1648, %v1647
    %v1661 = vpack.c.b16 %v1650, %v1649
    %v1662 = vpack.c.b16 %v1652, %v1651
    %v1663 = vpack.c.b16 %v1654, %v1653
    %v1664 = vpack.c.b16 %v1656, %v1655
    %1673 = vmatprep.subr.bf16.mxu0 0
    %1674 = vmatpush1.bf16.msra.mxu0 %v1657
    %1675 = vmatprep.subr.bf16.mxu0 0
    %1676 = vmatpush1.bf16.msra.mxu0 %v1658
    %1677 = vmatprep.subr.bf16.mxu0 0
    %1678 = vmatpush1.bf16.msra.mxu0 %v1659
    %1679 = vmatprep.subr.bf16.mxu0 0
    %1680 = vmatpush1.bf16.msra.mxu0 %v1660
    %1681 = vmatprep.subr.bf16.mxu0 0
    %1682 = vmatpush1.bf16.msra.mxu0 %v1661
    %1683 = vmatprep.subr.bf16.mxu0 0
    %1684 = vmatpush1.bf16.msra.mxu0 %v1662
    %1685 = vmatprep.subr.bf16.mxu0 0
    %1686 = vmatpush1.bf16.msra.mxu0 %v1663
    %1687 = vmatprep.subr.bf16.mxu0 0
    %1688 = vmatpush1.bf16.msra.mxu0 %v1664
    %1689 = vmatprep.subr.bf16.mxu0 0
    %1690 = vmatpush1.bf16.msra.mxu0 0
    %1691 = vmatprep.subr.bf16.mxu0 0
    %1692 = vmatpush1.bf16.msra.mxu0 0
    %1693 = vmatprep.subr.bf16.mxu0 0
    %1694 = vmatpush1.bf16.msra.mxu0 0
    %1695 = vmatprep.subr.bf16.mxu0 0
    %1696 = vmatpush1.bf16.msra.mxu0 0
    %1697 = vmatprep.subr.bf16.mxu0 0
    %1698 = vmatpush1.bf16.msra.mxu0 0
    %1699 = vmatprep.subr.bf16.mxu0 0
    %1700 = vmatpush1.bf16.msra.mxu0 0
    %1701 = vmatprep.subr.bf16.mxu0 0
    %1702 = vmatpush1.bf16.msra.mxu0 0
    %1703 = vmatprep.subr.bf16.mxu0 0
    %1704 = vmatpush1.bf16.msra.mxu0 0
    %1705 = vmatprep.mubr.bf16.mxu0 0
    %1706 = vmatmul.mubr.bf16.gmra.mrb[0].mxu0 %v1624
    %v1707 = vpop.f32.mrb[0].mxu0
    %v1708 = vadd.f32 0.0, %v1707
    %v1709 = vpop.f32.mrb[0].mxu0
    %v1710 = vpop.f32.mrb[0].mxu0
    %v1711 = vadd.f32 0.0, %v1710
    %v1712 = vpop.f32.mrb[0].mxu0
    %1713 = vdwg.mxu0
    %v1714 = vadd.f32 %v1478, %v1708
    %v1715 = vadd.f32 %v1479, %v1711
    %v1716 = vld [vmem:[#allocation8 + $0xd] sm:$0x1]
    %v1717 = vlaneseq
    %v1718 = vshrl.u32 %v1717, 7
    %v1719 = vsub.s32 0, %v1718
    %v1720 = vrot.slane %v1716, %v1719
    %v1721 = vadd.f32 %v1714, %v1720
    %v1722 = vadd.f32 %v1715, %v1720
    %v1724 = vsel %vm1006, %v98, 0
    %1726 = vmatprep.subr.mxu0 0.0
    %1727 = vmatpush1.msra.mxu0 %v1721
    %1728 = vmatprep.subr.mxu0 0.0
    %1729 = vmatpush1.msra.mxu0 %v1722
    %1730 = vmatprep.subr.mxu0 0.0
    %1731 = vmatpush1.msra.mxu0 0.0
    %1732 = vmatprep.subr.mxu0 0.0
    %1733 = vmatpush1.msra.mxu0 0.0
    %1734 = vmatprep.subr.mxu0 0.0
    %1735 = vmatpush1.msra.mxu0 0.0
    %1736 = vmatprep.subr.mxu0 0.0
    %1737 = vmatpush1.msra.mxu0 0.0
    %1738 = vmatprep.subr.mxu0 0.0
    %1739 = vmatpush1.msra.mxu0 0.0
    %1740 = vmatprep.subr.mxu0 0.0
    %1741 = vmatpush1.msra.mxu0 0.0
    %1742 = vmatprep.subr.mxu0 0.0
    %1743 = vmatpush1.msra.mxu0 0.0
    %1744 = vmatprep.subr.mxu0 0.0
    %1745 = vmatpush1.msra.mxu0 0.0
    %1746 = vmatprep.subr.mxu0 0.0
    %1747 = vmatpush1.msra.mxu0 0.0
    %1748 = vmatprep.subr.mxu0 0.0
    %1749 = vmatpush1.msra.mxu0 0.0
    %1750 = vmatprep.subr.mxu0 0.0
    %1751 = vmatpush1.msra.mxu0 0.0
    %1752 = vmatprep.subr.mxu0 0.0
    %1753 = vmatpush1.msra.mxu0 0.0
    %1754 = vmatprep.subr.mxu0 0.0
    %1755 = vmatpush1.msra.mxu0 0.0
    %1756 = vmatprep.subr.mxu0 0.0
    %1757 = vmatpush1.msra.mxu0 0.0
    %1758 = vmatprep.subr.mxu0 0.0
    %1759 = vmatpush1.msra.mxu0 0.0
    %1760 = vmatprep.subr.mxu0 0.0
    %1761 = vmatpush1.msra.mxu0 0.0
    %1762 = vmatprep.subr.mxu0 0.0
    %1763 = vmatpush1.msra.mxu0 0.0
    %1764 = vmatprep.subr.mxu0 0.0
    %1765 = vmatpush1.msra.mxu0 0.0
    %1766 = vmatprep.subr.mxu0 0.0
    %1767 = vmatpush1.msra.mxu0 0.0
    %1768 = vmatprep.subr.mxu0 0.0
    %1769 = vmatpush1.msra.mxu0 0.0
    %1770 = vmatprep.subr.mxu0 0.0
    %1771 = vmatpush1.msra.mxu0 0.0
    %1772 = vmatprep.subr.mxu0 0.0
    %1773 = vmatpush1.msra.mxu0 0.0
    %1774 = vmatprep.subr.mxu0 0.0
    %1775 = vmatpush1.msra.mxu0 0.0
    %1776 = vmatprep.subr.mxu0 0.0
    %1777 = vmatpush1.msra.mxu0 0.0
    %1778 = vmatprep.subr.mxu0 0.0
    %1779 = vmatpush1.msra.mxu0 0.0
    %1780 = vmatprep.subr.mxu0 0.0
    %1781 = vmatpush1.msra.mxu0 0.0
    %1782 = vmatprep.subr.mxu0 0.0
    %1783 = vmatpush1.msra.mxu0 0.0
    %1784 = vmatprep.subr.mxu0 0.0
    %1785 = vmatpush1.msra.mxu0 0.0
    %1786 = vmatprep.subr.mxu0 0.0
    %1787 = vmatpush1.msra.mxu0 0.0
    %1788 = vmatprep.subr.mxu0 0.0
    %1789 = vmatpush1.msra.mxu0 0.0
    %1790 = vmatprep.mubr.f32.mxu0 0.0
    %1791 = vmatmul.mubr.f32.gmra.mrb[0].mxu0 %v1724
    %v1792 = vpop.f32.mrb[0].mxu0
    %v1793 = vadd.f32 0.0, %v1792
    %v1794 = vpop.f32.mrb[0].mxu0
    %1795 = vdwg.mxu0
    %v1796 = vld [vmem:[#allocation8 + $0xe] sm:$0x1]
    %v1797 = vld [vmem:[#allocation8 + $0xf] sm:$0x1]
    %vm1798 = vcmask 254976
    %v1799 = vsel %vm1798, %v1793, 0.0
    %1800 = vadd.xlane.f32.xlu0 %v1799
    %v1801 = vpop.xlane.xlu0 %1800
    %v1802 = vmul.f32 %v1801, %v110
    %v1803 = vmul.f32 %v1793, %v1793
    %v1804 = vsel %vm1798, %v1803, 0.0
    %1805 = vadd.xlane.f32.xlu0 %v1804
    %v1806 = vpop.xlane.xlu0 %1805
    %v1807 = vmul.f32 %v1806, %v110
    %v1808 = vmul.f32 %v1802, %v1802
    %v1809 = vsub.f32 %v1807, %v1808
    %v1810 = vsub.f32 %v1793, %v1802
    %v1811 = vadd.f32 %v1809, 1e-05
    %v1812 = vrsqrt.pop %v1811
    %v1813 = vmul.f32 %v1810, %v1812
    %v1814 = vlaneseq
    %v1815 = vshrl.u32 %v1814, 7
    %v1816 = vsub.s32 0, %v1815
    %v1817 = vrot.slane %v1796, %v1816
    %v1818 = vmul.f32 %v1813, %v1817
    %v1819 = vlaneseq
    %v1820 = vshrl.u32 %v1819, 7
    %v1821 = vsub.s32 0, %v1820
    %v1822 = vrot.slane %v1797, %v1821
    %v1823 = vadd.f32 %v1818, %v1822
    %v1824 = vld [vmem:[#allocation7 + $0x100] sm:$0xf]
    %v1825 = vld [vmem:[#allocation7 + $0x104] sm:$0xf]
    %v1826 = vld [vmem:[#allocation7 + $0x108] sm:$0xf]
    %v1827 = vld [vmem:[#allocation7 + $0x10c] sm:$0xf]
    %v1828 = vpack.c.bf16 %v1823, %v1823
    %v1829 = vld [vmem:[#allocation8 + $0x10] sm:$0x1]
    %v1830 = vlaneseq
    %v1831 = vshrl.u32 %v1830, 7
    %v1832 = vsub.s32 0, %v1831
    %v1833 = vrot.slane %v1829, %v1832
    %v1838 = vunpack.c.l.b16 %v1824
    %v1839 = vunpack.c.l.b16 %v1825
    %v1840 = vunpack.c.l.b16 %v1826
    %v1841 = vunpack.c.l.b16 %v1827
    %v1842 = vpack.c.b16 %v1839, %v1838
    %v1843 = vpack.c.b16 %v1841, %v1840
    %v1847 = vsel %vm103, %v1828, 0
    %1849 = vmatprep.subr.bf16.mxu0 0
    %1850 = vmatpush1.bf16.msra.mxu0 %v1842
    %1851 = vmatprep.subr.bf16.mxu0 0
    %1852 = vmatpush1.bf16.msra.mxu0 %v1843
    %1853 = vmatprep.subr.bf16.mxu0 0
    %1854 = vmatpush1.bf16.msra.mxu0 0
    %1855 = vmatprep.subr.bf16.mxu0 0
    %1856 = vmatpush1.bf16.msra.mxu0 0
    %1857 = vmatprep.subr.bf16.mxu0 0
    %1858 = vmatpush1.bf16.msra.mxu0 0
    %1859 = vmatprep.subr.bf16.mxu0 0
    %1860 = vmatpush1.bf16.msra.mxu0 0
    %1861 = vmatprep.subr.bf16.mxu0 0
    %1862 = vmatpush1.bf16.msra.mxu0 0
    %1863 = vmatprep.subr.bf16.mxu0 0
    %1864 = vmatpush1.bf16.msra.mxu0 0
    %1865 = vmatprep.subr.bf16.mxu0 0
    %1866 = vmatpush1.bf16.msra.mxu0 0
    %1867 = vmatprep.subr.bf16.mxu0 0
    %1868 = vmatpush1.bf16.msra.mxu0 0
    %1869 = vmatprep.subr.bf16.mxu0 0
    %1870 = vmatpush1.bf16.msra.mxu0 0
    %1871 = vmatprep.subr.bf16.mxu0 0
    %1872 = vmatpush1.bf16.msra.mxu0 0
    %1873 = vmatprep.subr.bf16.mxu0 0
    %1874 = vmatpush1.bf16.msra.mxu0 0
    %1875 = vmatprep.subr.bf16.mxu0 0
    %1876 = vmatpush1.bf16.msra.mxu0 0
    %1877 = vmatprep.subr.bf16.mxu0 0
    %1878 = vmatpush1.bf16.msra.mxu0 0
    %1879 = vmatprep.subr.bf16.mxu0 0
    %1880 = vmatpush1.bf16.msra.mxu0 0
    %1881 = vmatprep.mubr.bf16.mxu0 0
    %1882 = vmatmul.mubr.bf16.gmra.mrb[0].mxu0 %v1847
    %v1883 = vpop.f32.mrb[0].mxu0
    %v1884 = vadd.f32 %v1833, %v1883
    %v1885 = vpop.f32.mrb[0].mxu0
    %v1886 = vpop.f32.mrb[0].mxu0
    %v1887 = vpop.f32.mrb[0].mxu0
    %1888 = vdwg.mxu0
    %v1889 = vmax.f32 %v1884, 0.0
    %v1890 = vld [vmem:[#allocation7 + $0x110] sm:$0xf]
    %v1891 = vld [vmem:[#allocation7 + $0x114] sm:$0xf]
    %v1892 = vld [vmem:[#allocation7 + $0x118] sm:$0xf]
    %v1893 = vld [vmem:[#allocation7 + $0x11c] sm:$0xf]
    %v1894 = vpack.c.bf16 %v1889, %v1889
    %v1895 = vld [vmem:[#allocation8 + $0x11] sm:$0x1]
    %v1896 = vlaneseq
    %v1897 = vshrl.u32 %v1896, 7
    %v1898 = vsub.s32 0, %v1897
    %v1899 = vrot.slane %v1895, %v1898
    %v1904 = vunpack.c.l.b16 %v1890
    %v1905 = vunpack.c.l.b16 %v1891
    %v1906 = vunpack.c.l.b16 %v1892
    %v1907 = vunpack.c.l.b16 %v1893
    %v1908 = vpack.c.b16 %v1905, %v1904
    %v1909 = vpack.c.b16 %v1907, %v1906
    %v1913 = vsel %vm103, %v1894, 0
    %1915 = vmatprep.subr.bf16.mxu0 0
    %1916 = vmatpush1.bf16.msra.mxu0 %v1908
    %1917 = vmatprep.subr.bf16.mxu0 0
    %1918 = vmatpush1.bf16.msra.mxu0 %v1909
    %1919 = vmatprep.subr.bf16.mxu0 0
    %1920 = vmatpush1.bf16.msra.mxu0 0
    %1921 = vmatprep.subr.bf16.mxu0 0
    %1922 = vmatpush1.bf16.msra.mxu0 0
    %1923 = vmatprep.subr.bf16.mxu0 0
    %1924 = vmatpush1.bf16.msra.mxu0 0
    %1925 = vmatprep.subr.bf16.mxu0 0
    %1926 = vmatpush1.bf16.msra.mxu0 0
    %1927 = vmatprep.subr.bf16.mxu0 0
    %1928 = vmatpush1.bf16.msra.mxu0 0
    %1929 = vmatprep.subr.bf16.mxu0 0
    %1930 = vmatpush1.bf16.msra.mxu0 0
    %1931 = vmatprep.subr.bf16.mxu0 0
    %1932 = vmatpush1.bf16.msra.mxu0 0
    %1933 = vmatprep.subr.bf16.mxu0 0
    %1934 = vmatpush1.bf16.msra.mxu0 0
    %1935 = vmatprep.subr.bf16.mxu0 0
    %1936 = vmatpush1.bf16.msra.mxu0 0
    %1937 = vmatprep.subr.bf16.mxu0 0
    %1938 = vmatpush1.bf16.msra.mxu0 0
    %1939 = vmatprep.subr.bf16.mxu0 0
    %1940 = vmatpush1.bf16.msra.mxu0 0
    %1941 = vmatprep.subr.bf16.mxu0 0
    %1942 = vmatpush1.bf16.msra.mxu0 0
    %1943 = vmatprep.subr.bf16.mxu0 0
    %1944 = vmatpush1.bf16.msra.mxu0 0
    %1945 = vmatprep.subr.bf16.mxu0 0
    %1946 = vmatpush1.bf16.msra.mxu0 0
    %1947 = vmatprep.mubr.bf16.mxu0 0
    %1948 = vmatmul.mubr.bf16.gmra.mrb[0].mxu0 %v1913
    %v1949 = vpop.f32.mrb[0].mxu0
    %v1950 = vadd.f32 %v1899, %v1949
    %v1951 = vpop.f32.mrb[0].mxu0
    %v1952 = vpop.f32.mrb[0].mxu0
    %v1953 = vpop.f32.mrb[0].mxu0
    %1954 = vdwg.mxu0
    %1955 = vst [vmem:[#allocation11] sm:$0x3] %v1950
    // Predicated region
    $region42: #{tpu_custom_call.1} parent=1 // pred_check
      _
    $region43: #{tpu_custom_call.1} parent=1 // pred_check_branch
      %1957 = sbr.rel (0) target = $region45
    $region44: #{tpu_custom_call.1} parent=1 // pred_region
      %s1959 = ssub.s32 32, 32
      %1960 = vsyncadd [#allocation4], %s1959
      %s1962 = sshll.u32 [#allocation11], 4
      %s1963 = int_to_ptr.vmem [resolvable:$true] %s1962
      %1965 = dma.vmem_to_hbm [thread:$0]  %s1963, 32, %s5, [#allocation4]
    $region45: #{tpu_custom_call.1} parent=1 // pred_fallthru
      _
    // Predicated region
    $region46: #{tpu_custom_call.1} parent=1 // pred_check
      _
    $region47: #{tpu_custom_call.1} parent=1 // pred_check_branch
      %1967 = sbr.rel (0) target = $region49
    $region48: #{tpu_custom_call.1} parent=1 // pred_region
      %1968 = dma.done [#allocation4], 32
    $region49: #{tpu_custom_call.1} parent=1 // pred_fallthru
      _
    %1969 = vsyncpa [#allocation3], 1
    %1970 = vsyncpa [#allocation6], 1
    %1971 = vsyncpa [#allocation9], 1
    %1972 = vsyncpa [#allocation4], 1

</llo_original>
